<compile_context>
chip_gen: v7x
topology: tpu7x:2x2x1
jax: 0.10.0
libtpu: 0.0.40
codegen_flags: <defaults>
</compile_context>

<pallas_src>
import functools
import math
import numpy as np
import jax
import jax.numpy as jnp
from jax.experimental import pallas as pl
from jax.experimental.pallas import tpu as pltpu

# ----------------------------------------------------------------------------
# Irreps configuration (constructor arguments): (mul, l, parity); +1="e", -1="o"
# ----------------------------------------------------------------------------
IRREPS_IN     = [(8, 0, 1), (4, 1, -1)]     # "8x0e + 4x1o"  node features
IRREPS_EDGE   = [(1, 0, 1), (1, 1, -1)]     # "1x0e + 1x1o"  edge attributes (SH, lmax=1)
IRREPS_HIDDEN = [(16, 0, 1), (8, 1, -1)]    # "16x0e + 8x1o"
IRREPS_OUT    = [(8, 0, 1), (4, 1, -1)]     # "8x0e + 4x1o"
LN_EPS = 1e-5
D_OUT_PAD = 128                             # lane-dense output / message channel width


def irreps_dim(irreps):
    return sum(mul * (2 * l + 1) for mul, l, _ in irreps)


def irreps_offsets(irreps):
    offs, o = [], 0
    for mul, l, _ in irreps:
        offs.append(o)
        o += mul * (2 * l + 1)
    return offs


# ----------------------------------------------------------------------------
# Real-basis Wigner 3j blocks (vector-component order y, z, x as in e3nn).
# ----------------------------------------------------------------------------
def wigner_3j(l1, l2, l3):
    if (l1, l2, l3) == (0, 0, 0):
        return np.ones((1, 1, 1), np.float64)
    if (l1, l2, l3) == (1, 1, 0):
        return (np.eye(3) / math.sqrt(3.0)).reshape(3, 3, 1)
    if (l1, l2, l3) == (1, 0, 1):
        return (np.eye(3) / math.sqrt(3.0)).reshape(3, 1, 3)
    if (l1, l2, l3) == (0, 1, 1):
        return (np.eye(3) / math.sqrt(3.0)).reshape(1, 3, 3)
    if (l1, l2, l3) == (1, 1, 1):
        eps = np.zeros((3, 3, 3), np.float64)
        for a, b, c in ((0, 1, 2), (1, 2, 0), (2, 0, 1)):
            eps[a, b, c] = 1.0
            eps[a, c, b] = -1.0
        return eps / math.sqrt(6.0)
    if (l1, l2, l3) == (1, 1, 2):
        # Orthonormal real symmetric-traceless basis (may differ from e3nn's 2e basis by
        # an orthogonal transform inside the irrep; guarded by the assert in init_params).
        y, z, x = 0, 1, 2

        def sym(a, b):
            m = np.zeros((3, 3), np.float64)
            m[a, b] += 0.5
            m[b, a] += 0.5
            return m

        m_xy, m_yz, m_zx = sym(x, y), sym(y, z), sym(z, x)
        m_z2 = np.zeros((3, 3), np.float64)
        m_z2[z, z], m_z2[x, x], m_z2[y, y] = 2.0, -1.0, -1.0
        m_x2y2 = np.zeros((3, 3), np.float64)
        m_x2y2[x, x], m_x2y2[y, y] = 1.0, -1.0
        mats = [m / (np.linalg.norm(m) * math.sqrt(5.0))
                for m in (m_xy, m_yz, m_z2, m_zx, m_x2y2)]
        return np.stack(mats, axis=-1)
    raise NotImplementedError(f"wigner_3j({l1},{l2},{l3}) not needed for this config")


# ----------------------------------------------------------------------------
# e3nn structure replication: FullTensorProduct + o3.Linear as flat matrices
# ----------------------------------------------------------------------------
def full_tensor_product(irreps1, irreps2):
    """Output slots (sorted, as FullTensorProduct does) + 'uvuv' instructions."""
    slots, instrs = [], []
    for i1, (m1, l1, p1) in enumerate(irreps1):
        for i2, (m2, l2, p2) in enumerate(irreps2):
            for l3 in range(abs(l1 - l2), l1 + l2 + 1):
                instrs.append((i1, i2, len(slots), l3))
                slots.append((m1 * m2, l3, p1 * p2))
    order = sorted(range(len(slots)),
                   key=lambda s: (slots[s][1], -slots[s][2] * (-1) ** slots[s][1]))
    pos = {s: k for k, s in enumerate(order)}
    sorted_slots = [slots[s] for s in order]
    instrs = [(i1, i2, pos[s], l3) for i1, i2, s, l3 in instrs]
    return sorted_slots, instrs


def build_tp_tensor(irreps1, irreps2):
    """Dense CG tensor C[i,j,k]: tp_out_k = sum_ij C[i,j,k] * x_i * e_j."""
    slots, instrs = full_tensor_product(irreps1, irreps2)
    off1, off2, off3 = irreps_offsets(irreps1), irreps_offsets(irreps2), irreps_offsets(slots)
    C = np.zeros((irreps_dim(irreps1), irreps_dim(irreps2), irreps_dim(slots)), np.float64)
    for i1, i2, s, l3 in instrs:
        m1, l1, _ = irreps1[i1]
        m2, l2, _ = irreps2[i2]
        w = wigner_3j(l1, l2, l3) * math.sqrt(2 * l3 + 1)   # 'component' normalization
        d1, d2, d3 = 2 * l1 + 1, 2 * l2 + 1, 2 * l3 + 1
        for u in range(m1):
            for v in range(m2):
                C[off1[i1] + u * d1: off1[i1] + (u + 1) * d1,
                  off2[i2] + v * d2: off2[i2] + (v + 1) * d2,
                  off3[s] + (u * m2 + v) * d3: off3[s] + (u * m2 + v + 1) * d3] = w
    return C, slots


def build_equivariant_linear(rng, irreps_in, irreps_out):
    """Flattened matrix of an e3nn o3.Linear (same-irrep blocks, 1/sqrt(fan_in))."""
    W = np.zeros((irreps_dim(irreps_in), irreps_dim(irreps_out)), np.float64)
    offi, offo = irreps_offsets(irreps_in), irreps_offsets(irreps_out)
    for io, (mo, lo, po) in enumerate(irreps_out):
        matches = [ii for ii, (mi, li, pi) in enumerate(irreps_in) if (li, pi) == (lo, po)]
        fan_in = sum(irreps_in[ii][0] for ii in matches)
        if fan_in == 0:
            continue
        d = 2 * lo + 1
        for ii in matches:
            mi = irreps_in[ii][0]
            w = rng.standard_normal((mi, mo)) / math.sqrt(fan_in)
            for m in range(d):
                W[offi[ii] + m: offi[ii] + mi * d: d,
                  offo[io] + m: offo[io] + mo * d: d] = w
    return W


def init_params(seed=0):
    # Guard (review): the hand-rolled (1,1,1)/(1,1,2) Wigner blocks are only guaranteed to
    # match e3nn for the TP channels that actually survive linear1; with the irreps below
    # only 0e/1o channels survive, which use the exact identity/sqrt(3) blocks.
    assert all((l, p) in ((0, 1), (1, -1)) for _, l, p in IRREPS_HIDDEN), (
        "IRREPS_HIDDEN would pick up TP channels whose hand-rolled Wigner basis is "
        "unverified against e3nn (l>=2 or even-parity l=1)")
    rng = np.random.default_rng(seed)
    C, tp_slots = build_tp_tensor(IRREPS_IN, IRREPS_EDGE)
    W1 = build_equivariant_linear(rng, tp_slots, IRREPS_HIDDEN)    # linear1
    W2 = build_equivariant_linear(rng, IRREPS_HIDDEN, IRREPS_OUT)  # linear2
    d_out = irreps_dim(IRREPS_OUT)
    gamma = np.ones((d_out,), np.float32)                          # LayerNorm weight
    beta = np.zeros((d_out,), np.float32)                          # LayerNorm bias
    return (jnp.asarray(C, jnp.float32), jnp.asarray(W1, jnp.float32),
            jnp.asarray(W2, jnp.float32), jnp.asarray(gamma), jnp.asarray(beta))


# ----------------------------------------------------------------------------
# Kernel 1: edge-streamed gather -> folded (TP+lin1+lin2) -> scatter-add
# grid = (core_split ["parallel"], edge tiles ["arbitrary"])
# ----------------------------------------------------------------------------
def emp_accumulate_kernel(x_ref, ea_ref, src_ref, dst_ref, m_ref, o_ref,
                          xm_ref, gid_ref, sid_ref):
    t = pl.program_id(1)

    @pl.when(t == 0)
    def _init():
        # per-core partial accumulator
        o_ref[...] = jnp.zeros_like(o_ref)
        # grid-invariant precompute, hoisted out of the edge loop:
        #   xM = node_features @ M_flat  -> (N_pad, D_edge*128), stored once in bf16
        xm_ref[...] = jnp.dot(x_ref[...], m_ref[...],
                              preferred_element_type=jnp.float32).astype(xm_ref.dtype)
        #   node-id iota planes for gather / (pre-transposed) scatter one-hots
        gid_ref[...] = jax.lax.broadcasted_iota(jnp.int32, gid_ref.shape, 1)
        sid_ref[...] = jax.lax.broadcasted_iota(jnp.int32, sid_ref.shape, 0)

    d_edge = ea_ref.shape[1]
    d_out_pad = o_ref.shape[1]

    # gather: one-hot(src) @ xM  (int compare + ONE cast to bf16; f32 accumulation)
    gather = (src_ref[...] == gid_ref[...]).astype(xm_ref.dtype)           # (TE, N_pad)
    x_srcm = jnp.dot(gather, xm_ref[...],
                     preferred_element_type=jnp.float32)                   # (TE, D_edge*128)

    # contract the (tiny) edge-attr channel: msg[e,o] = sum_j ea[e,j] * x_srcm[e, j*128+o]
    # every slice is 128-lane aligned (no relayout copies).
    ea = ea_ref[...]
    msg = ea[:, 0:1] * x_srcm[:, 0:d_out_pad]
    for j in range(1, d_edge):
        msg = msg + ea[:, j:j + 1] * x_srcm[:, j * d_out_pad:(j + 1) * d_out_pad]

    # scatter-add: pre-transposed one-hot(dst) (N_pad, TE) @ msg -> natural MXU orientation,
    # lane-dense (128-wide) accumulator stores.
    scatter_t = (sid_ref[...] == dst_ref[...]).astype(jnp.bfloat16)        # (N_pad, TE)
    o_ref[...] += jnp.dot(scatter_t, msg.astype(jnp.bfloat16),
                          preferred_element_type=jnp.float32)


# ----------------------------------------------------------------------------
# Kernel 2: combine per-core partials + LayerNorm (tiny, single block)
# ----------------------------------------------------------------------------
def emp_finalize_kernel(part_ref, ln_ref, o_ref, *, core_split, n_pad, d_out_real):
    agg = part_ref[0:n_pad, :]
    for c in range(1, core_split):
        agg = agg + part_ref[c * n_pad:(c + 1) * n_pad, :]

    # LayerNorm over the REAL d_out lanes only; padded lanes of agg are exact zeros.
    lane = jax.lax.broadcasted_iota(jnp.int32, agg.shape, 1)
    mask = lane < d_out_real
    mu = jnp.sum(agg, axis=-1, keepdims=True) / d_out_real
    diff = agg - mu
    diff_m = jnp.where(mask, diff, 0.0)
    var = jnp.sum(diff_m * diff_m, axis=-1, keepdims=True) / d_out_real
    h = diff * jax.lax.rsqrt(var + LN_EPS)
    o_ref[...] = h * ln_ref[0:1, :] + ln_ref[1:2, :]          # dropout == identity (eval)


def _vmem_limit_bytes(n_pad, tile_e, d_in, d_edge, d_msg, d_out_pad, core_split):
    """Actual working-set estimate, 2x headroom, clamped under v7x's 64 MiB physical VMEM."""
    f32, bf16, i32 = 4, 2, 4
    resident = n_pad * d_in * f32 + d_in * d_msg * f32 + n_pad * d_out_pad * f32
    streamed = 2 * (tile_e * d_edge * f32 + tile_e * i32 + tile_e * i32)   # double-buffered
    scratch = n_pad * d_msg * bf16 + 2 * tile_e * n_pad * i32
    live = 2 * tile_e * n_pad * bf16 + tile_e * d_msg * f32 + tile_e * d_out_pad * f32
    total = resident + streamed + scratch + live
    assert 2 * total <= 48 * 1024 * 1024, (
        "tile_e x n_pad working set too large for v7x VMEM; reduce tile_e or tile nodes")
    return int(min(max(2 * total, 32 * 1024 * 1024), 48 * 1024 * 1024))


def equivariant_message_passing(node_features, edge_index, edge_attr, node_pos, params,
                                *, tile_e=1024, core_split=2):
    """Edges streamed in tiles (grid axis 1, "arbitrary" reduction); a leading "parallel"
    axis splits the edge range across TensorCores (v7x); partials + LayerNorm fused in a
    tiny second kernel. Node accumulators, xM and iota planes stay resident in VMEM."""
    del node_pos  # unused by the reference module's forward (kept for signature parity)
    C, W1, W2, gamma, beta = params
    N, d_in = node_features.shape
    E, d_edge = edge_attr.shape
    d_out = W2.shape[1]
    d_out_pad = D_OUT_PAD
    d_msg = d_edge * d_out_pad
    assert tile_e % 128 == 0 and core_split >= 1

    # fold CG tensor + both equivariant linears into one wide message matrix, output
    # channel padded to a full 128-lane so every matmul / store is lane-dense.
    M = jnp.einsum('ijk,kh,ho->ijo', C, W1, W2)                            # (d_in, d_edge, d_out)
    M_flat = jnp.zeros((d_in, d_edge, d_out_pad), jnp.float32).at[:, :, :d_out].set(M)
    M_flat = M_flat.reshape(d_in, d_msg)

    ln = jnp.zeros((2, d_out_pad), jnp.float32)
    ln = ln.at[0, :d_out].set(gamma.astype(jnp.float32)).at[1, :d_out].set(beta.astype(jnp.float32))

    # pad nodes to a sublane multiple; padded nodes get no messages and are sliced off
    n_pad = ((N + 7) // 8) * 8
    x = jnp.zeros((n_pad, d_in), jnp.float32).at[:N].set(node_features.astype(jnp.float32))

    # pad edges to a multiple of core_split*tile_e; padded edges have zero edge_attr -> zero msg
    chunk = core_split * tile_e
    e_pad = ((E + chunk - 1) // chunk) * chunk
    steps = e_pad // chunk
    ea = jnp.zeros((e_pad, d_edge), jnp.float32).at[:E].set(edge_attr.astype(jnp.float32))
    src = jnp.zeros((e_pad, 1), jnp.int32).at[:E, 0].set(edge_index[0].astype(jnp.int32))
    dst = jnp.zeros((1, e_pad), jnp.int32).at[0, :E].set(edge_index[1].astype(jnp.int32))

    vmem_limit = _vmem_limit_bytes(n_pad, tile_e, d_in, d_edge, d_msg, d_out_pad, core_split)

    partial = pl.pallas_call(
        emp_accumulate_kernel,
        out_shape=jax.ShapeDtypeStruct((core_split * n_pad, d_out_pad), jnp.float32),
        grid=(core_split, steps),
        in_specs=[
            pl.BlockSpec((n_pad, d_in), lambda c, t: (0, 0)),              # node features (resident)
            pl.BlockSpec((tile_e, d_edge), lambda c, t: (c * steps + t, 0)),  # edge attrs (streamed)
            pl.BlockSpec((tile_e, 1), lambda c, t: (c * steps + t, 0)),    # src ids (column)
            pl.BlockSpec((1, tile_e), lambda c, t: (0, c * steps + t)),    # dst ids (row, pre-transposed)
            pl.BlockSpec((d_in, d_msg), lambda c, t: (0, 0)),              # folded TP+lin1+lin2 (resident)
        ],
        out_specs=pl.BlockSpec((n_pad, d_out_pad), lambda c, t: (c, 0)),   # per-core partial (resident)
        scratch_shapes=[
            pltpu.VMEM((n_pad, d_msg), jnp.bfloat16),                      # xM = x @ M_flat
            pltpu.VMEM((tile_e, n_pad), jnp.int32),                        # gather iota plane
            pltpu.VMEM((n_pad, tile_e), jnp.int32),                        # scatter iota plane (T)
        ],
        compiler_params=pltpu.CompilerParams(
            dimension_semantics=("parallel", "arbitrary"),
            vmem_limit_bytes=vmem_limit,
        ),
    )(x, ea, src, dst, M_flat)

    out = pl.pallas_call(
        functools.partial(emp_finalize_kernel, core_split=core_split,
                          n_pad=n_pad, d_out_real=d_out),
        out_shape=jax.ShapeDtypeStruct((n_pad, d_out_pad), jnp.float32),
        grid=(1,),
        in_specs=[
            pl.BlockSpec((core_split * n_pad, d_out_pad), lambda i: (0, 0)),
            pl.BlockSpec((2, d_out_pad), lambda i: (0, 0)),
        ],
        out_specs=pl.BlockSpec((n_pad, d_out_pad), lambda i: (0, 0)),
    )(partial, ln)

    return out[:N, :d_out]


# ----------------------------------------------------------------------------
# Pure-JAX reference (literal translation of the PyTorch forward, eval mode, f32)
# ----------------------------------------------------------------------------
def reference_forward(node_features, edge_index, edge_attr, node_pos, params):
    del node_pos
    C, W1, W2, gamma, beta = params
    src, dst = edge_index[0], edge_index[1]
    x_src = node_features[src]                                   # gather
    tp = jnp.einsum('ei,ej,ijk->ek', x_src, edge_attr, C)        # FullTensorProduct
    msg = tp @ W1                                                # linear1 (gate is None)
    msg = msg @ W2                                               # linear2
    agg = jnp.zeros((node_features.shape[0], msg.shape[1]), msg.dtype).at[dst].add(msg)
    mu = jnp.mean(agg, axis=-1, keepdims=True)
    var = jnp.mean(jnp.square(agg - mu), axis=-1, keepdims=True)
    h = (agg - mu) * jax.lax.rsqrt(var + LN_EPS) * gamma + beta  # LayerNorm
    return h                                                     # dropout: identity (eval)


if __name__ == "__main__":
    key = jax.random.PRNGKey(0)
    k_x, k_ea, k_src, k_dst, k_pos = jax.random.split(key, 5)

    N, E = 12, 384
    d_in, d_edge = irreps_dim(IRREPS_IN), irreps_dim(IRREPS_EDGE)

    node_features = jax.random.normal(k_x, (N, d_in), jnp.float32)          # (12, 20)
    edge_attr = jax.random.normal(k_ea, (E, d_edge), jnp.float32)           # (384, 4)
    edge_index = jnp.stack([jax.random.randint(k_src, (E,), 0, N, jnp.int32),
                            jax.random.randint(k_dst, (E,), 0, N, jnp.int32)])
    node_pos = jax.random.normal(k_pos, (N, 3), jnp.float32)                # unused by fwd

    params = init_params(0)

    # tile_e=128, core_split=2 -> grid=(2, 2): exercises both the parallel core split and
    # the multi-step edge pipeline even at this toy size (default tile_e=1024 for real runs).
    out = equivariant_message_passing(node_features, edge_index, edge_attr, node_pos,
                                      params, tile_e=128, core_split=2)
    out = jax.block_until_ready(out)

    ref = reference_forward(node_features, edge_index, edge_attr, node_pos, params)
    assert out.shape == (N, irreps_dim(IRREPS_OUT))
    err = float(np.max(np.abs(np.asarray(out) - np.asarray(ref))))
    # Tolerance reflects bf16 MXU operands (one-hots are exact in bf16; xM / msg carry
    # ~2^-9 relative rounding before f32 accumulation) vs the f32 reference.
    assert np.allclose(np.asarray(out), np.asarray(ref), rtol=3e-2, atol=3e-2), err

    print("KERNEL_OK")
</pallas_src>

<mosaic_0001>
module attributes {stable_mosaic.version = 11 : i64} {
  func.func @emp_accumulate_kernel(%arg0: i32, %arg1: i32, %arg2: memref<16x20xf32, #tpu.memory_space<vmem>>, %arg3: memref<128x4xf32, #tpu.memory_space<vmem>>, %arg4: memref<128x1xi32, #tpu.memory_space<vmem>>, %arg5: memref<1x128xi32, #tpu.memory_space<vmem>>, %arg6: memref<20x512xf32, #tpu.memory_space<vmem>>, %arg7: memref<16x128xf32, #tpu.memory_space<vmem>>, %arg8: memref<16x512xbf16, #tpu.memory_space<vmem>>, %arg9: memref<128x16xi32, #tpu.memory_space<vmem>>, %arg10: memref<16x128xi32, #tpu.memory_space<vmem>>) attributes {dimension_semantics = [#tpu.dimension_semantics<parallel>, #tpu.dimension_semantics<arbitrary>], iteration_bounds = array<i64: 2, 2>, scalar_prefetch = 0 : i64, scratch_operands = 3 : i64, tpu.core_type = #tpu.core_type<tc>, window_params = [{pipeline_mode = #tpu.pipeline_mode<synchronous>, transform_indices = @transform_0, window_bounds = array<i64: 16, 20>}, {transform_indices = @transform_1, window_bounds = array<i64: 128, 4>}, {transform_indices = @transform_2, window_bounds = array<i64: 128, 1>}, {transform_indices = @transform_3, window_bounds = array<i64: 1, 128>}, {pipeline_mode = #tpu.pipeline_mode<synchronous>, transform_indices = @transform_4, window_bounds = array<i64: 20, 512>}, {transform_indices = @transform_5, window_bounds = array<i64: 16, 128>}]} {
    %c0_i32 = arith.constant 0 : i32
    %0 = arith.cmpi eq, %arg1, %c0_i32 : i32
    %1 = arith.extui %0 : i1 to i32
    %c0_i32_0 = arith.constant 0 : i32
    %2 = arith.cmpi ne, %1, %c0_i32_0 : i32
    scf.if %2 {
      %cst_17 = arith.constant 0.000000e+00 : f32
      %44 = vector.broadcast %cst_17 : f32 to vector<16x128xf32>
      %c0_18 = arith.constant 0 : index
      %c0_19 = arith.constant 0 : index
      %45 = vector.load %arg7[%c0_18, %c0_19] : memref<16x128xf32, #tpu.memory_space<vmem>>, vector<16x128xf32>
      tpu.vector_store %arg7[%c0_18, %c0_19], %44 {strides = array<i32>} : memref<16x128xf32, #tpu.memory_space<vmem>>, vector<16x128xf32>,
      %c0_20 = arith.constant 0 : index
      %c0_21 = arith.constant 0 : index
      %46 = vector.load %arg2[%c0_20, %c0_21] : memref<16x20xf32, #tpu.memory_space<vmem>>, vector<16x20xf32>
      %c0_22 = arith.constant 0 : index
      %c0_23 = arith.constant 0 : index
      %47 = vector.load %arg6[%c0_22, %c0_23] : memref<20x512xf32, #tpu.memory_space<vmem>>, vector<20x512xf32>
      %cst_24 = arith.constant dense<0.000000e+00> : vector<16x512xf32>
      %48 = tpu.matmul %46, %47, %cst_24 {dimension_numbers = #tpu.dot_dimension_numbers<[1], [0], [0], [1], [0, 0, 1, 1], [], []>} : vector<16x20xf32>, vector<20x512xf32>, vector<16x512xf32> -> vector<16x512xf32>
      %49 = arith.truncf %48 : vector<16x512xf32> to vector<16x512xbf16>
      %c0_25 = arith.constant 0 : index
      %c0_26 = arith.constant 0 : index
      %50 = vector.load %arg8[%c0_25, %c0_26] : memref<16x512xbf16, #tpu.memory_space<vmem>>, vector<16x512xbf16>
      tpu.vector_store %arg8[%c0_25, %c0_26], %49 {strides = array<i32>} : memref<16x512xbf16, #tpu.memory_space<vmem>>, vector<16x512xbf16>,
      %51 = tpu.iota {dimensions = array<i32: 1>} : vector<128x16xi32>
      %c0_27 = arith.constant 0 : index
      %c0_28 = arith.constant 0 : index
      %52 = vector.load %arg9[%c0_27, %c0_28] : memref<128x16xi32, #tpu.memory_space<vmem>>, vector<128x16xi32>
      tpu.vector_store %arg9[%c0_27, %c0_28], %51 {strides = array<i32>} : memref<128x16xi32, #tpu.memory_space<vmem>>, vector<128x16xi32>,
      %53 = tpu.iota {dimensions = array<i32: 0>} : vector<16x128xi32>
      %c0_29 = arith.constant 0 : index
      %c0_30 = arith.constant 0 : index
      %54 = vector.load %arg10[%c0_29, %c0_30] : memref<16x128xi32, #tpu.memory_space<vmem>>, vector<16x128xi32>
      tpu.vector_store %arg10[%c0_29, %c0_30], %53 {strides = array<i32>} : memref<16x128xi32, #tpu.memory_space<vmem>>, vector<16x128xi32>,
    } else {
    }
    %c0 = arith.constant 0 : index
    %c0_1 = arith.constant 0 : index
    %3 = vector.load %arg4[%c0, %c0_1] : memref<128x1xi32, #tpu.memory_space<vmem>>, vector<128x1xi32>
    %c0_2 = arith.constant 0 : index
    %c0_3 = arith.constant 0 : index
    %4 = vector.load %arg9[%c0_2, %c0_3] : memref<128x16xi32, #tpu.memory_space<vmem>>, vector<128x16xi32>
    %5 = vector.broadcast %3 : vector<128x1xi32> to vector<128x16xi32>
    %6 = arith.cmpi eq, %5, %4 : vector<128x16xi32>
    %7 = arith.extui %6 : vector<128x16xi1> to vector<128x16xi32>
    %8 = arith.sitofp %7 : vector<128x16xi32> to vector<128x16xf32>
    %9 = arith.truncf %8 : vector<128x16xf32> to vector<128x16xbf16>
    %c0_4 = arith.constant 0 : index
    %c0_5 = arith.constant 0 : index
    %10 = vector.load %arg8[%c0_4, %c0_5] : memref<16x512xbf16, #tpu.memory_space<vmem>>, vector<16x512xbf16>
    %cst = arith.constant dense<0.000000e+00> : vector<128x512xf32>
    %11 = tpu.matmul %9, %10, %cst {dimension_numbers = #tpu.dot_dimension_numbers<[1], [0], [0], [1], [0, 0, 1, 1], [], []>} : vector<128x16xbf16>, vector<16x512xbf16>, vector<128x512xf32> -> vector<128x512xf32>
    %c0_6 = arith.constant 0 : index
    %c0_7 = arith.constant 0 : index
    %12 = vector.load %arg3[%c0_6, %c0_7] : memref<128x4xf32, #tpu.memory_space<vmem>>, vector<128x4xf32>
    %13 = vector.extract_strided_slice %12 {offsets = [0, 0], sizes = [128, 1], strides = [1, 1]} : vector<128x4xf32> to vector<128x1xf32>
    %14 = vector.extract_strided_slice %11 {offsets = [0, 0], sizes = [128, 128], strides = [1, 1]} : vector<128x512xf32> to vector<128x128xf32>
    %15 = vector.broadcast %13 : vector<128x1xf32> to vector<128x128xf32>
    %16 = arith.mulf %15, %14 : vector<128x128xf32>
    %17 = vector.extract_strided_slice %12 {offsets = [0, 1], sizes = [128, 1], strides = [1, 1]} : vector<128x4xf32> to vector<128x1xf32>
    %18 = vector.extract_strided_slice %11 {offsets = [0, 128], sizes = [128, 128], strides = [1, 1]} : vector<128x512xf32> to vector<128x128xf32>
    %19 = vector.broadcast %17 : vector<128x1xf32> to vector<128x128xf32>
    %20 = arith.mulf %19, %18 : vector<128x128xf32>
    %21 = arith.addf %16, %20 : vector<128x128xf32>
    %22 = vector.extract_strided_slice %12 {offsets = [0, 2], sizes = [128, 1], strides = [1, 1]} : vector<128x4xf32> to vector<128x1xf32>
    %23 = vector.extract_strided_slice %11 {offsets = [0, 256], sizes = [128, 128], strides = [1, 1]} : vector<128x512xf32> to vector<128x128xf32>
    %24 = vector.broadcast %22 : vector<128x1xf32> to vector<128x128xf32>
    %25 = arith.mulf %24, %23 : vector<128x128xf32>
    %26 = arith.addf %21, %25 : vector<128x128xf32>
    %27 = vector.extract_strided_slice %12 {offsets = [0, 3], sizes = [128, 1], strides = [1, 1]} : vector<128x4xf32> to vector<128x1xf32>
    %28 = vector.extract_strided_slice %11 {offsets = [0, 384], sizes = [128, 128], strides = [1, 1]} : vector<128x512xf32> to vector<128x128xf32>
    %29 = vector.broadcast %27 : vector<128x1xf32> to vector<128x128xf32>
    %30 = arith.mulf %29, %28 : vector<128x128xf32>
    %31 = arith.addf %26, %30 : vector<128x128xf32>
    %c0_8 = arith.constant 0 : index
    %c0_9 = arith.constant 0 : index
    %32 = vector.load %arg10[%c0_8, %c0_9] : memref<16x128xi32, #tpu.memory_space<vmem>>, vector<16x128xi32>
    %c0_10 = arith.constant 0 : index
    %c0_11 = arith.constant 0 : index
    %33 = vector.load %arg5[%c0_10, %c0_11] : memref<1x128xi32, #tpu.memory_space<vmem>>, vector<1x128xi32>
    %34 = vector.broadcast %33 : vector<1x128xi32> to vector<16x128xi32>
    %35 = arith.cmpi eq, %32, %34 : vector<16x128xi32>
    %36 = arith.extui %35 : vector<16x128xi1> to vector<16x128xi32>
    %37 = arith.sitofp %36 : vector<16x128xi32> to vector<16x128xf32>
    %38 = arith.truncf %37 : vector<16x128xf32> to vector<16x128xbf16>
    %c0_12 = arith.constant 0 : index
    %c0_13 = arith.constant 0 : index
    %39 = vector.load %arg7[%c0_12, %c0_13] : memref<16x128xf32, #tpu.memory_space<vmem>>, vector<16x128xf32>
    %40 = arith.truncf %31 : vector<128x128xf32> to vector<128x128xbf16>
    %cst_14 = arith.constant dense<0.000000e+00> : vector<16x128xf32>
    %41 = tpu.matmul %38, %40, %cst_14 {dimension_numbers = #tpu.dot_dimension_numbers<[1], [0], [0], [1], [0, 0, 1, 1], [], []>} : vector<16x128xbf16>, vector<128x128xbf16>, vector<16x128xf32> -> vector<16x128xf32>
    %42 = arith.addf %39, %41 : vector<16x128xf32>
    %c0_15 = arith.constant 0 : index
    %c0_16 = arith.constant 0 : index
    %43 = vector.load %arg7[%c0_15, %c0_16] : memref<16x128xf32, #tpu.memory_space<vmem>>, vector<16x128xf32>
    tpu.vector_store %arg7[%c0_15, %c0_16], %42 {strides = array<i32>} : memref<16x128xf32, #tpu.memory_space<vmem>>, vector<16x128xf32>,
    return
  }
  func.func @transform_0(%arg0: i32, %arg1: i32) -> (i32, i32) {
    %c0_i32 = arith.constant 0 : i32
    %c0_i32_0 = arith.constant 0 : i32
    %c0_i32_1 = arith.constant 0 : i32
    return %c0_i32, %c0_i32_0 : i32, i32
  }
  func.func @transform_1(%arg0: i32, %arg1: i32) -> (i32, i32) {
    %c2_i32 = arith.constant 2 : i32
    %0 = arith.muli %arg0, %c2_i32 : i32
    %1 = arith.addi %0, %arg1 : i32
    %c0_i32 = arith.constant 0 : i32
    %c0_i32_0 = arith.constant 0 : i32
    return %1, %c0_i32 : i32, i32
  }
  func.func @transform_2(%arg0: i32, %arg1: i32) -> (i32, i32) {
    %c2_i32 = arith.constant 2 : i32
    %0 = arith.muli %arg0, %c2_i32 : i32
    %1 = arith.addi %0, %arg1 : i32
    %c0_i32 = arith.constant 0 : i32
    %c0_i32_0 = arith.constant 0 : i32
    return %1, %c0_i32 : i32, i32
  }
  func.func @transform_3(%arg0: i32, %arg1: i32) -> (i32, i32) {
    %c2_i32 = arith.constant 2 : i32
    %0 = arith.muli %arg0, %c2_i32 : i32
    %1 = arith.addi %0, %arg1 : i32
    %c0_i32 = arith.constant 0 : i32
    %c0_i32_0 = arith.constant 0 : i32
    return %c0_i32, %1 : i32, i32
  }
  func.func @transform_4(%arg0: i32, %arg1: i32) -> (i32, i32) {
    %c0_i32 = arith.constant 0 : i32
    %c0_i32_0 = arith.constant 0 : i32
    %c0_i32_1 = arith.constant 0 : i32
    return %c0_i32, %c0_i32_0 : i32, i32
  }
  func.func @transform_5(%arg0: i32, %arg1: i32) -> (i32, i32) {
    %c0_i32 = arith.constant 0 : i32
    %c0_i32_0 = arith.constant 0 : i32
    return %arg0, %c0_i32 : i32, i32
  }
}

</mosaic_0001>

<llo_original>
// kernel: tpu_custom_call.1
$region0: #{tpu_custom_call.1}
  #allocation0 [shape = 'u32[]', space=smem, size = 0x4, offset = 0x4, fixed_abs, tag = 'smem constant byte address 0x4 - core index']
  #allocation1 [shape = 'u32[144,128]{1,0:T(1,128)}', space=vmem, size = 0x12000, scoped, tag = 'internal scratch']
  #allocation2 [shape = 'bf16[16,512]{1,0:T(16,128)(2,1)}', space=vmem, size = 0x4000, scoped, tag = 'scratch operand']
  #allocation3 [shape = 's32[128,16]{1,0:T(8,128)}', space=vmem, size = 0x10000, scoped, tag = 'scratch operand']
  #allocation4 [shape = 's32[16,128]{1,0:T(8,128)}', space=vmem, size = 0x2000, scoped, tag = 'scratch operand']
  %s0 = inlined_call_operand.vmem [shape: f32[16,20], index: 0, kind: input, shape index: {}]
  %s1 = inlined_call_operand.vmem [shape: f32[512,4], index: 1, kind: input, shape index: {}]
  %s2 = inlined_call_operand.vmem [shape: s32[512,1], index: 2, kind: input, shape index: {}]
  %s3 = inlined_call_operand.vmem [shape: s32[1,512], index: 3, kind: input, shape index: {}]
  %s4 = inlined_call_operand.vmem [shape: f32[20,512], index: 4, kind: input, shape index: {}]
  %s5 = inlined_call_operand.hbm [shape: f32[32,128], index: 5, kind: output, shape index: {}]
  %s6 = sld [smem:[#allocation0]]
  $region57: #{tpu_custom_call.1} parent=0
    _
  %s8 = ssub.s32 1, %s6
  %s9 = scalar_select 0, %s8, %s6
  $region1: #{tpu_custom_call.1} parent=0
    #allocation5 [shape = 'u8[16384]{0}', space=vmem, size = 0x4000, scoped, tag = 'output window, operand 0']
    #allocation6 [shape = 's32[2]{0}', space=sflag, size = 0x8, scoped, tag = 'scoped memory for tpu_custom_call.1']
    %10 = vsyncpa [#allocation6], 0
    %s11 = scalar_lea.sflag [#allocation6], 1
    %12 = vsyncpa %s11, 0
    loop: start=0, step=1, limit=6
    $region2: #{tpu_custom_call.1} parent=1 // loop_pre_header
      _
    $region3: #{tpu_custom_call.1} parent=1 // loop_header
      %s14 = sphi 0, %s18
      %p15 = scmp.ge.s32.totalorder %s14, 6
      %s21 = sphi 0, %s33
      %s22 = sphi 0, %s29
      %s23 = sphi 0, %s21
      %s24 = sphi 0, %s22
      %s25 = sphi 0, %s23
      %s26 = sphi 0, %s24
      %s34 = sphi 0, %s34
      %s36 = sphi 0, %s34
      %s37 = sphi 0, %s36
      %s51 = sphi 0, %s37
      %s61 = sphi 0, %s63
      %s64 = sphi 0, %s61
      %s65 = sphi 0, %s64
      %s81 = sphi 0, %s65
      %s91 = sphi 0, %s93
      %s94 = sphi 0, %s91
      %s95 = sphi 0, %s94
      %s111 = sphi 0, %s95
      %s121 = sphi 0, %s123
      %s124 = sphi 0, %s121
      %s125 = sphi 0, %s124
      %s141 = sphi 0, %s125
      %s145 = sphi 0, %s145
      %s147 = sphi 0, %s145
      %s148 = sphi 0, %s147
      %s162 = sphi 0, %s148
      %s168 = sphi 0, %s170
      %s171 = sphi 0, %s168
      %s172 = sphi 0, %s171
      %s188 = sphi 0, %s172
    $region4: #{tpu_custom_call.1} parent=1 // loop_header_branch
      %17 = sbr.rel (%p15) target = $region8
    $region5: #{tpu_custom_call.1} parent=1 // loop_body
      %s19 = ssub.s32 %s14, 1
      %s20 = ssub.s32 %s14, 2
      %s27 = sadd.s32 1, %s22
      %p28 = scmp.ge.s32.totalorder %s27, 2
      %s29 = scalar_select %p28, 0, %s27
      %s30 = sadd.s32 1, %s21
      %s31 = scalar_select %p28, %s30, %s21
      %p32 = scmp.ge.s32.totalorder %s31, 2
      %s33 = scalar_select %p32, 0, %s31
      %s35 = sadd.s32 %s34, 1
      %p38 = scmp.eq.s32.totalorder %s14, 3
      %p39 = scmp.ne.s32.totalorder %s34, %s36
      %p40 = scmp.eq.s32.totalorder %s14, 0
      %p41 = por %p39, %p40
      %p42 = scmp.ne.s32.totalorder %s34, %s36
      %p43 = scmp.eq.s32.totalorder %s19, 3
      %p44 = por %p42, %p43
      %p45 = scmp.ne.s32.totalorder %s36, %s37
      %p46 = scmp.eq.s32.totalorder %s19, 0
      %p47 = por %p45, %p46
      %p48 = scmp.ne.s32.totalorder %s36, %s37
      %p49 = scmp.eq.s32.totalorder %s20, 3
      %p50 = por %p48, %p49
      %p52 = scmp.ne.s32.totalorder %s37, %s51
      %p53 = scmp.eq.s32.totalorder %s20, 0
      %p54 = por %p52, %p53
      %s55 = smul.u32 %s21, 2
      %s56 = sadd.s32 %s55, %s22
      %s57 = smul.u32 %s33, 2
      %s58 = sadd.s32 %s57, %s29
      %s59 = ssub.s32 %s56, %s58
      %p60 = scmp.eq.s32.totalorder %s59, 0
      %s62 = sadd.s32 %s61, 1
      %s63 = scalar_select %p60, %s61, %s62
      %p66 = pneg %p60
      %p67 = scmp.eq.s32.totalorder %s14, 3
      %p68 = por %p66, %p67
      %p69 = scmp.ne.s32.totalorder %s61, %s64
      %p70 = scmp.eq.s32.totalorder %s14, 0
      %p71 = por %p69, %p70
      %p72 = scmp.ne.s32.totalorder %s61, %s64
      %p73 = scmp.eq.s32.totalorder %s19, 3
      %p74 = por %p72, %p73
      %p75 = scmp.ne.s32.totalorder %s64, %s65
      %p76 = scmp.eq.s32.totalorder %s19, 0
      %p77 = por %p75, %p76
      %p78 = scmp.ne.s32.totalorder %s64, %s65
      %p79 = scmp.eq.s32.totalorder %s20, 3
      %p80 = por %p78, %p79
      %p82 = scmp.ne.s32.totalorder %s65, %s81
      %p83 = scmp.eq.s32.totalorder %s20, 0
      %p84 = por %p82, %p83
      %s85 = smul.u32 %s21, 2
      %s86 = sadd.s32 %s85, %s22
      %s87 = smul.u32 %s33, 2
      %s88 = sadd.s32 %s87, %s29
      %s89 = ssub.s32 %s86, %s88
      %p90 = scmp.eq.s32.totalorder %s89, 0
      %s92 = sadd.s32 %s91, 1
      %s93 = scalar_select %p90, %s91, %s92
      %p96 = pneg %p90
      %p97 = scmp.eq.s32.totalorder %s14, 3
      %p98 = por %p96, %p97
      %p99 = scmp.ne.s32.totalorder %s91, %s94
      %p100 = scmp.eq.s32.totalorder %s14, 0
      %p101 = por %p99, %p100
      %p102 = scmp.ne.s32.totalorder %s91, %s94
      %p103 = scmp.eq.s32.totalorder %s19, 3
      %p104 = por %p102, %p103
      %p105 = scmp.ne.s32.totalorder %s94, %s95
      %p106 = scmp.eq.s32.totalorder %s19, 0
      %p107 = por %p105, %p106
      %p108 = scmp.ne.s32.totalorder %s94, %s95
      %p109 = scmp.eq.s32.totalorder %s20, 3
      %p110 = por %p108, %p109
      %p112 = scmp.ne.s32.totalorder %s95, %s111
      %p113 = scmp.eq.s32.totalorder %s20, 0
      %p114 = por %p112, %p113
      %s115 = smul.u32 %s21, 2
      %s116 = sadd.s32 %s115, %s22
      %s117 = smul.u32 %s33, 2
      %s118 = sadd.s32 %s117, %s29
      %s119 = ssub.s32 %s116, %s118
      %p120 = scmp.eq.s32.totalorder %s119, 0
      %s122 = sadd.s32 %s121, 1
      %s123 = scalar_select %p120, %s121, %s122
      %p126 = pneg %p120
      %p127 = scmp.eq.s32.totalorder %s14, 3
      %p128 = por %p126, %p127
      %p129 = scmp.ne.s32.totalorder %s121, %s124
      %p130 = scmp.eq.s32.totalorder %s14, 0
      %p131 = por %p129, %p130
      %p132 = scmp.ne.s32.totalorder %s121, %s124
      %p133 = scmp.eq.s32.totalorder %s19, 3
      %p134 = por %p132, %p133
      %p135 = scmp.ne.s32.totalorder %s124, %s125
      %p136 = scmp.eq.s32.totalorder %s19, 0
      %p137 = por %p135, %p136
      %p138 = scmp.ne.s32.totalorder %s124, %s125
      %p139 = scmp.eq.s32.totalorder %s20, 3
      %p140 = por %p138, %p139
      %p142 = scmp.ne.s32.totalorder %s125, %s141
      %p143 = scmp.eq.s32.totalorder %s20, 0
      %p144 = por %p142, %p143
      %s146 = sadd.s32 %s145, 1
      %p149 = scmp.eq.s32.totalorder %s14, 3
      %p150 = scmp.ne.s32.totalorder %s145, %s147
      %p151 = scmp.eq.s32.totalorder %s14, 0
      %p152 = por %p150, %p151
      %p153 = scmp.ne.s32.totalorder %s145, %s147
      %p154 = scmp.eq.s32.totalorder %s19, 3
      %p155 = por %p153, %p154
      %p156 = scmp.ne.s32.totalorder %s147, %s148
      %p157 = scmp.eq.s32.totalorder %s19, 0
      %p158 = por %p156, %p157
      %p159 = scmp.ne.s32.totalorder %s147, %s148
      %p160 = scmp.eq.s32.totalorder %s20, 3
      %p161 = por %p159, %p160
      %p163 = scmp.ne.s32.totalorder %s148, %s162
      %p164 = scmp.eq.s32.totalorder %s20, 0
      %p165 = por %p163, %p164
      %s166 = ssub.s32 %s21, %s33
      %p167 = scmp.eq.s32.totalorder %s166, 0
      %s169 = sadd.s32 %s168, 1
      %s170 = scalar_select %p167, %s168, %s169
      %p173 = pneg %p167
      %p174 = scmp.eq.s32.totalorder %s14, 3
      %p175 = por %p173, %p174
      %p176 = scmp.ne.s32.totalorder %s168, %s171
      %p177 = scmp.eq.s32.totalorder %s14, 0
      %p178 = por %p176, %p177
      %p179 = scmp.ne.s32.totalorder %s168, %s171
      %p180 = scmp.eq.s32.totalorder %s19, 3
      %p181 = por %p179, %p180
      %p182 = scmp.ne.s32.totalorder %s171, %s172
      %p183 = scmp.eq.s32.totalorder %s19, 0
      %p184 = por %p182, %p183
      %p185 = scmp.ne.s32.totalorder %s171, %s172
      %p186 = scmp.eq.s32.totalorder %s20, 3
      %p187 = por %p185, %p186
      %p189 = scmp.ne.s32.totalorder %s172, %s188
      %p190 = scmp.eq.s32.totalorder %s20, 0
      %p191 = por %p189, %p190
      %p192 = scmp.le.s32.totalorder 1, %s14
      %p193 = scmp.lt.s32.totalorder %s14, 5
      %p194 = pnand %p192, %p193
      %p195 = pneg %p194
      // Predicated region
      $region9: #{tpu_custom_call.1} parent=5 // pred_check
        _
      $region10: #{tpu_custom_call.1} parent=5 // pred_check_branch
        %197 = sbr.rel (%p194) target = $region12
      $region11: #{tpu_custom_call.1} parent=5 // pred_region
        %s198 = ssub.s32 %s14, 1
        // Predicated region
        $region13: #{tpu_custom_call.1} parent=11 // pred_check
          %p199 = pneg %p47
        $region14: #{tpu_custom_call.1} parent=11 // pred_check_branch
          %201 = sbr.rel (%p199) target = $region16
        $region15: #{tpu_custom_call.1} parent=11 // pred_region
          _
        $region16: #{tpu_custom_call.1} parent=11 // pred_fallthru
          _
        // Predicated region
        $region17: #{tpu_custom_call.1} parent=11 // pred_check
          %p202 = pneg %p158
        $region18: #{tpu_custom_call.1} parent=11 // pred_check_branch
          %204 = sbr.rel (%p202) target = $region20
        $region19: #{tpu_custom_call.1} parent=11 // pred_region
          _
        $region20: #{tpu_custom_call.1} parent=11 // pred_fallthru
          _
      $region12: #{tpu_custom_call.1} parent=5 // pred_fallthru
        _
      %p205 = scmp.lt.s32.totalorder %s14, 4
      // Predicated region
      $region21: #{tpu_custom_call.1} parent=5 // pred_check
        %p206 = pneg %p205
      $region22: #{tpu_custom_call.1} parent=5 // pred_check_branch
        %208 = sbr.rel (%p206) target = $region24
      $region23: #{tpu_custom_call.1} parent=5 // pred_region
        // Predicated region
        $region25: #{tpu_custom_call.1} parent=23 // pred_check
          %p209 = pneg %p71
        $region26: #{tpu_custom_call.1} parent=23 // pred_check_branch
          %211 = sbr.rel (%p209) target = $region28
        $region27: #{tpu_custom_call.1} parent=23 // pred_region
          %s212 = smul.u32 %s21, 2
          %s213 = sadd.s32 %s212, %s22
          %s214 = smul.u32 16, %s213
          %p215 = scmp.lt.s32.totalorder %s214, 63
          %s216 = scalar_select %p215, %s214, 63
          %s217 = smul.addr %s216, 8
          %s218 = scalar_lea.vmem %s1, %s217
          %s219 = smul.u32 %s21, 2
          %s220 = sadd.s32 %s219, %s22
          %s221 = smul.u32 16, %s220
        $region28: #{tpu_custom_call.1} parent=23 // pred_fallthru
          _
        // Predicated region
        $region29: #{tpu_custom_call.1} parent=23 // pred_check
          %p222 = pneg %p101
        $region30: #{tpu_custom_call.1} parent=23 // pred_check_branch
          %224 = sbr.rel (%p222) target = $region32
        $region31: #{tpu_custom_call.1} parent=23 // pred_region
          %s225 = smul.u32 %s21, 2
          %s226 = sadd.s32 %s225, %s22
          %s227 = smul.u32 16, %s226
          %p228 = scmp.lt.s32.totalorder %s227, 63
          %s229 = scalar_select %p228, %s227, 63
          %s230 = smul.addr %s229, 8
          %s231 = scalar_lea.vmem %s2, %s230
          %s232 = smul.u32 %s21, 2
          %s233 = sadd.s32 %s232, %s22
          %s234 = smul.u32 16, %s233
        $region32: #{tpu_custom_call.1} parent=23 // pred_fallthru
          _
        // Predicated region
        $region33: #{tpu_custom_call.1} parent=23 // pred_check
          %p235 = pneg %p131
        $region34: #{tpu_custom_call.1} parent=23 // pred_check_branch
          %237 = sbr.rel (%p235) target = $region36
        $region35: #{tpu_custom_call.1} parent=23 // pred_region
          %s238 = smul.u32 %s21, 2
          %s239 = sadd.s32 %s238, %s22
          %p240 = scmp.lt.s32.totalorder %s239, 3
          %s241 = scalar_select %p240, %s239, 3
          %s242 = scalar_lea.vmem %s3, %s241
          %s243 = smul.u32 %s21, 2
          %s244 = sadd.s32 %s243, %s22
        $region36: #{tpu_custom_call.1} parent=23 // pred_fallthru
          _
      $region24: #{tpu_custom_call.1} parent=5 // pred_fallthru
        _
      %p245 = scmp.le.s32.totalorder 1, %s14
      %p246 = scmp.lt.s32.totalorder %s14, 5
      %p247 = pnand %p245, %p246
      %p248 = pneg %p247
      // Predicated region
      $region37: #{tpu_custom_call.1} parent=5 // pred_check
        _
      $region38: #{tpu_custom_call.1} parent=5 // pred_check_branch
        %250 = sbr.rel (%p247) target = $region40
      $region39: #{tpu_custom_call.1} parent=5 // pred_region
        %s251 = ssub.s32 %s14, 1
        %p252 = pneg %p47
        %p253 = pneg %p44
        %s254 = smul.u32 %s23, 2
        %s255 = sadd.s32 %s254, %s24
        %s256 = smul.u32 16, %s255
        %p257 = scmp.lt.s32.totalorder %s256, 63
        %s258 = scalar_select %p257, %s256, 63
        %s259 = smul.addr %s258, 8
        %s260 = scalar_lea.vmem %s1, %s259
        %p261 = pneg %p77
        %p262 = pneg %p74
        %s263 = smul.u32 %s23, 2
        %s264 = sadd.s32 %s263, %s24
        %s265 = smul.u32 16, %s264
        %p266 = scmp.lt.s32.totalorder %s265, 63
        %s267 = scalar_select %p266, %s265, 63
        %s268 = smul.addr %s267, 8
        %s269 = scalar_lea.vmem %s2, %s268
        %p270 = pneg %p107
        %p271 = pneg %p104
        %s272 = smul.u32 %s23, 2
        %s273 = sadd.s32 %s272, %s24
        %p274 = scmp.lt.s32.totalorder %s273, 3
        %s275 = scalar_select %p274, %s273, 3
        %s276 = scalar_lea.vmem %s3, %s275
        %p277 = pneg %p137
        %p278 = pneg %p134
        %p279 = pneg %p158
        %p280 = pneg %p155
        %p281 = pneg %p184
        %p282 = pneg %p181
        %s283 = sand.u32 %s171, 1
        %s284 = scalar_lea.sflag [#allocation6], %s283
        %s285 = sand.u32 %s171, 1
        %s286 = smul.addr %s285, 16
        %s287 = scalar_lea.vmem [#allocation5], %s286
        %s288 = smul.u32 %s23, 2
        %s289 = sadd.s32 %s288, %s24
        %s290 = smul.u32 16, %s289
        %p291 = scmp.lt.s32.totalorder %s290, 63
        %s292 = scalar_select %p291, %s290, 63
        %s293 = smul.addr %s292, 8
        %s294 = scalar_lea.vmem %s1, %s293
        %s295 = smul.u32 %s23, 2
        %s296 = sadd.s32 %s295, %s24
        %s297 = smul.u32 16, %s296
        %s298 = smul.u32 %s23, 2
        %s299 = sadd.s32 %s298, %s24
        %s300 = smul.u32 16, %s299
        %p301 = scmp.lt.s32.totalorder %s300, 63
        %s302 = scalar_select %p301, %s300, 63
        %s303 = smul.addr %s302, 8
        %s304 = scalar_lea.vmem %s2, %s303
        %s305 = smul.u32 %s23, 2
        %s306 = sadd.s32 %s305, %s24
        %s307 = smul.u32 16, %s306
        %s308 = smul.u32 %s23, 2
        %s309 = sadd.s32 %s308, %s24
        %p310 = scmp.lt.s32.totalorder %s309, 3
        %s311 = scalar_select %p310, %s309, 3
        %s312 = scalar_lea.vmem %s3, %s311
        %s313 = smul.u32 %s23, 2
        %s314 = sadd.s32 %s313, %s24
        %s315 = smul.u32 2, %s23
        %p317 = scmp.eq.s32.totalorder %s24, 0
        // Predicated region
        $region41: #{tpu_custom_call.1} parent=39 // pred_check
          %p318 = pneg %p317
        $region42: #{tpu_custom_call.1} parent=39 // pred_check_branch
          %320 = sbr.rel (%p318) target = $region44
        $region43: #{tpu_custom_call.1} parent=39 // pred_region
          %321 = vst [vmem:[%s287] sm:$0xff] 0.0
          %322 = vst [vmem:[%s287 + $0x8] sm:$0xff] 0.0
          %v323 = vld [vmem:[%s0] sm:$0xff]
          %v324 = vld [vmem:[%s0 + $0x8] sm:$0xff]
          %v325 = vld [vmem:[%s4] sm:$0xff]
          %v326 = vld [vmem:[%s4 + $0x8] sm:$0xff]
          %v327 = vld [vmem:[%s4 + $0x10] sm:$0xff]
          %v328 = vld [vmem:[%s4 + $0x18] sm:$0xff]
          %v329 = vld [vmem:[%s4 + $0x20] sm:$0xff]
          %v330 = vld [vmem:[%s4 + $0x28] sm:$0xff]
          %v331 = vld [vmem:[%s4 + $0x30] sm:$0xff]
          %v332 = vld [vmem:[%s4 + $0x38] sm:$0xff]
          %v333 = vld [vmem:[%s4 + $0x40] sm:$0xf]
          %v334 = vld [vmem:[%s4 + $0x48] sm:$0xf]
          %v335 = vld [vmem:[%s4 + $0x50] sm:$0xf]
          %v336 = vld [vmem:[%s4 + $0x58] sm:$0xf]
          %vm337 = vcmask 162816
          %v339 = vsel %vm337, %v323, 0
          %v342 = vsel %vm337, %v324, 0
          %vm344 = vcmask 1043456
          %v346 = vsel %vm344, %v333, 0
          %v349 = vsel %vm344, %v334, 0
          %v352 = vsel %vm344, %v335, 0
          %v355 = vsel %vm344, %v336, 0
          %357 = vmatprep.subr.mxu0 %v326
          %358 = vmatpush1.msra.mxu0 %v325
          %359 = vmatprep.subr.mxu0 %v330
          %360 = vmatpush1.msra.mxu0 %v329
          %361 = vmatprep.subr.mxu0 %v349
          %362 = vmatpush1.msra.mxu0 %v346
          %363 = vmatprep.subr.mxu0 0.0
          %364 = vmatpush1.msra.mxu0 0.0
          %365 = vmatprep.subr.mxu0 0.0
          %366 = vmatpush1.msra.mxu0 0.0
          %367 = vmatprep.subr.mxu0 0.0
          %368 = vmatpush1.msra.mxu0 0.0
          %369 = vmatprep.subr.mxu0 0.0
          %370 = vmatpush1.msra.mxu0 0.0
          %371 = vmatprep.subr.mxu0 0.0
          %372 = vmatpush1.msra.mxu0 0.0
          %373 = vmatprep.subr.mxu0 0.0
          %374 = vmatpush1.msra.mxu0 0.0
          %375 = vmatprep.subr.mxu0 0.0
          %376 = vmatpush1.msra.mxu0 0.0
          %377 = vmatprep.subr.mxu0 0.0
          %378 = vmatpush1.msra.mxu0 0.0
          %379 = vmatprep.subr.mxu0 0.0
          %380 = vmatpush1.msra.mxu0 0.0
          %381 = vmatprep.subr.mxu0 0.0
          %382 = vmatpush1.msra.mxu0 0.0
          %383 = vmatprep.subr.mxu0 0.0
          %384 = vmatpush1.msra.mxu0 0.0
          %385 = vmatprep.subr.mxu0 0.0
          %386 = vmatpush1.msra.mxu0 0.0
          %387 = vmatprep.subr.mxu0 0.0
          %388 = vmatpush1.msra.mxu0 0.0
          %389 = vmatprep.subr.mxu0 0.0
          %390 = vmatpush1.msra.mxu0 0.0
          %391 = vmatprep.subr.mxu0 0.0
          %392 = vmatpush1.msra.mxu0 0.0
          %393 = vmatprep.subr.mxu0 0.0
          %394 = vmatpush1.msra.mxu0 0.0
          %395 = vmatprep.subr.mxu0 0.0
          %396 = vmatpush1.msra.mxu0 0.0
          %397 = vmatprep.subr.mxu0 0.0
          %398 = vmatpush1.msra.mxu0 0.0
          %399 = vmatprep.subr.mxu0 0.0
          %400 = vmatpush1.msra.mxu0 0.0
          %401 = vmatprep.subr.mxu0 0.0
          %402 = vmatpush1.msra.mxu0 0.0
          %403 = vmatprep.subr.mxu0 0.0
          %404 = vmatpush1.msra.mxu0 0.0
          %405 = vmatprep.subr.mxu0 0.0
          %406 = vmatpush1.msra.mxu0 0.0
          %407 = vmatprep.subr.mxu0 0.0
          %408 = vmatpush1.msra.mxu0 0.0
          %409 = vmatprep.subr.mxu0 0.0
          %410 = vmatpush1.msra.mxu0 0.0
          %411 = vmatprep.subr.mxu0 0.0
          %412 = vmatpush1.msra.mxu0 0.0
          %413 = vmatprep.subr.mxu0 0.0
          %414 = vmatpush1.msra.mxu0 0.0
          %415 = vmatprep.subr.mxu0 0.0
          %416 = vmatpush1.msra.mxu0 0.0
          %417 = vmatprep.subr.mxu0 0.0
          %418 = vmatpush1.msra.mxu0 0.0
          %419 = vmatprep.subr.mxu0 0.0
          %420 = vmatpush1.msra.mxu0 0.0
          %421 = vmatprep.mubr.f32.mxu0 0.0
          %422 = vmatmul.mubr.f32.gmra.mrb[0].mxu0 %v339
          %v423 = vpop.f32.mrb[0].mxu0
          %v424 = vadd.f32 0.0, %v423
          %v425 = vpop.f32.mrb[0].mxu0
          %v426 = vadd.f32 0.0, %v425
          %427 = vmatprep.mubr.f32.mxu0 0.0
          %428 = vmatmul.mubr.f32.gmra.mrb[0].mxu0 %v342
          %v429 = vpop.f32.mrb[0].mxu0
          %v430 = vadd.f32 0.0, %v429
          %v431 = vpop.f32.mrb[0].mxu0
          %v432 = vadd.f32 0.0, %v431
          %433 = vdwg.mxu0
          %434 = vmatprep.subr.mxu0 %v328
          %435 = vmatpush1.msra.mxu0 %v327
          %436 = vmatprep.subr.mxu0 %v332
          %437 = vmatpush1.msra.mxu0 %v331
          %438 = vmatprep.subr.mxu0 %v355
          %439 = vmatpush1.msra.mxu0 %v352
          %440 = vmatprep.subr.mxu0 0.0
          %441 = vmatpush1.msra.mxu0 0.0
          %442 = vmatprep.subr.mxu0 0.0
          %443 = vmatpush1.msra.mxu0 0.0
          %444 = vmatprep.subr.mxu0 0.0
          %445 = vmatpush1.msra.mxu0 0.0
          %446 = vmatprep.subr.mxu0 0.0
          %447 = vmatpush1.msra.mxu0 0.0
          %448 = vmatprep.subr.mxu0 0.0
          %449 = vmatpush1.msra.mxu0 0.0
          %450 = vmatprep.subr.mxu0 0.0
          %451 = vmatpush1.msra.mxu0 0.0
          %452 = vmatprep.subr.mxu0 0.0
          %453 = vmatpush1.msra.mxu0 0.0
          %454 = vmatprep.subr.mxu0 0.0
          %455 = vmatpush1.msra.mxu0 0.0
          %456 = vmatprep.subr.mxu0 0.0
          %457 = vmatpush1.msra.mxu0 0.0
          %458 = vmatprep.subr.mxu0 0.0
          %459 = vmatpush1.msra.mxu0 0.0
          %460 = vmatprep.subr.mxu0 0.0
          %461 = vmatpush1.msra.mxu0 0.0
          %462 = vmatprep.subr.mxu0 0.0
          %463 = vmatpush1.msra.mxu0 0.0
          %464 = vmatprep.subr.mxu0 0.0
          %465 = vmatpush1.msra.mxu0 0.0
          %466 = vmatprep.subr.mxu0 0.0
          %467 = vmatpush1.msra.mxu0 0.0
          %468 = vmatprep.subr.mxu0 0.0
          %469 = vmatpush1.msra.mxu0 0.0
          %470 = vmatprep.subr.mxu0 0.0
          %471 = vmatpush1.msra.mxu0 0.0
          %472 = vmatprep.subr.mxu0 0.0
          %473 = vmatpush1.msra.mxu0 0.0
          %474 = vmatprep.subr.mxu0 0.0
          %475 = vmatpush1.msra.mxu0 0.0
          %476 = vmatprep.subr.mxu0 0.0
          %477 = vmatpush1.msra.mxu0 0.0
          %478 = vmatprep.subr.mxu0 0.0
          %479 = vmatpush1.msra.mxu0 0.0
          %480 = vmatprep.subr.mxu0 0.0
          %481 = vmatpush1.msra.mxu0 0.0
          %482 = vmatprep.subr.mxu0 0.0
          %483 = vmatpush1.msra.mxu0 0.0
          %484 = vmatprep.subr.mxu0 0.0
          %485 = vmatpush1.msra.mxu0 0.0
          %486 = vmatprep.subr.mxu0 0.0
          %487 = vmatpush1.msra.mxu0 0.0
          %488 = vmatprep.subr.mxu0 0.0
          %489 = vmatpush1.msra.mxu0 0.0
          %490 = vmatprep.subr.mxu0 0.0
          %491 = vmatpush1.msra.mxu0 0.0
          %492 = vmatprep.subr.mxu0 0.0
          %493 = vmatpush1.msra.mxu0 0.0
          %494 = vmatprep.subr.mxu0 0.0
          %495 = vmatpush1.msra.mxu0 0.0
          %496 = vmatprep.subr.mxu0 0.0
          %497 = vmatpush1.msra.mxu0 0.0
          %498 = vmatprep.mubr.f32.mxu0 0.0
          %499 = vmatmul.mubr.f32.gmra.mrb[0].mxu0 %v339
          %v500 = vpop.f32.mrb[0].mxu0
          %v501 = vadd.f32 0.0, %v500
          %v502 = vpop.f32.mrb[0].mxu0
          %v503 = vadd.f32 0.0, %v502
          %504 = vmatprep.mubr.f32.mxu0 0.0
          %505 = vmatmul.mubr.f32.gmra.mrb[0].mxu0 %v342
          %v506 = vpop.f32.mrb[0].mxu0
          %v507 = vadd.f32 0.0, %v506
          %v508 = vpop.f32.mrb[0].mxu0
          %v509 = vadd.f32 0.0, %v508
          %510 = vdwg.mxu0
          %v511 = vpack.c.bf16 %v430, %v424
          %v512 = vpack.c.bf16 %v432, %v426
          %v513 = vpack.c.bf16 %v507, %v501
          %v514 = vpack.c.bf16 %v509, %v503
          %515 = vst [vmem:[#allocation2] sm:$0xff] %v511
          %516 = vst [vmem:[#allocation2 + $0x8] sm:$0xff] %v512
          %517 = vst [vmem:[#allocation2 + $0x10] sm:$0xff] %v513
          %518 = vst [vmem:[#allocation2 + $0x18] sm:$0xff] %v514
          %v519 = vlaneseq
          %v520 = vand.u32 %v519, 127
          %vm521 = vcmask 130048
          %522 = vst.msk [vmem:[#allocation3] sm:$0xff] %vm521, %v520
          %523 = vst.msk [vmem:[#allocation3 + $0x8] sm:$0xff] %vm521, %v520
          %524 = vst.msk [vmem:[#allocation3 + $0x10] sm:$0xff] %vm521, %v520
          %525 = vst.msk [vmem:[#allocation3 + $0x18] sm:$0xff] %vm521, %v520
          %526 = vst.msk [vmem:[#allocation3 + $0x20] sm:$0xff] %vm521, %v520
          %527 = vst.msk [vmem:[#allocation3 + $0x28] sm:$0xff] %vm521, %v520
          %528 = vst.msk [vmem:[#allocation3 + $0x30] sm:$0xff] %vm521, %v520
          %529 = vst.msk [vmem:[#allocation3 + $0x38] sm:$0xff] %vm521, %v520
          %530 = vst.msk [vmem:[#allocation3 + $0x40] sm:$0xff] %vm521, %v520
          %531 = vst.msk [vmem:[#allocation3 + $0x48] sm:$0xff] %vm521, %v520
          %532 = vst.msk [vmem:[#allocation3 + $0x50] sm:$0xff] %vm521, %v520
          %533 = vst.msk [vmem:[#allocation3 + $0x58] sm:$0xff] %vm521, %v520
          %534 = vst.msk [vmem:[#allocation3 + $0x60] sm:$0xff] %vm521, %v520
          %535 = vst.msk [vmem:[#allocation3 + $0x68] sm:$0xff] %vm521, %v520
          %536 = vst.msk [vmem:[#allocation3 + $0x70] sm:$0xff] %vm521, %v520
          %537 = vst.msk [vmem:[#allocation3 + $0x78] sm:$0xff] %vm521, %v520
          %v538 = vlaneseq
          %v539 = vshrl.u32 %v538, 7
          %v540 = vadd.s32 %v539, 8
          %541 = vst [vmem:[#allocation4] sm:$0xff] %v539
          %542 = vst [vmem:[#allocation4 + $0x8] sm:$0xff] %v540
        $region44: #{tpu_custom_call.1} parent=39 // pred_fallthru
          _
        %v543 = vld [vmem:[%s304] sm:$0xff]
        %v544 = vld [vmem:[%s304 + $0x8] sm:$0xff]
        %v545 = vld [vmem:[%s304 + $0x10] sm:$0xff]
        %v546 = vld [vmem:[%s304 + $0x18] sm:$0xff]
        %v547 = vld [vmem:[%s304 + $0x20] sm:$0xff]
        %v548 = vld [vmem:[%s304 + $0x28] sm:$0xff]
        %v549 = vld [vmem:[%s304 + $0x30] sm:$0xff]
        %v550 = vld [vmem:[%s304 + $0x38] sm:$0xff]
        %v551 = vld [vmem:[%s304 + $0x40] sm:$0xff]
        %v552 = vld [vmem:[%s304 + $0x48] sm:$0xff]
        %v553 = vld [vmem:[%s304 + $0x50] sm:$0xff]
        %v554 = vld [vmem:[%s304 + $0x58] sm:$0xff]
        %v555 = vld [vmem:[%s304 + $0x60] sm:$0xff]
        %v556 = vld [vmem:[%s304 + $0x68] sm:$0xff]
        %v557 = vld [vmem:[%s304 + $0x70] sm:$0xff]
        %v558 = vld [vmem:[%s304 + $0x78] sm:$0xff]
        %v559 = vld [vmem:[#allocation3] sm:$0xff]
        %v560 = vld [vmem:[#allocation3 + $0x8] sm:$0xff]
        %v561 = vld [vmem:[#allocation3 + $0x10] sm:$0xff]
        %v562 = vld [vmem:[#allocation3 + $0x18] sm:$0xff]
        %v563 = vld [vmem:[#allocation3 + $0x20] sm:$0xff]
        %v564 = vld [vmem:[#allocation3 + $0x28] sm:$0xff]
        %v565 = vld [vmem:[#allocation3 + $0x30] sm:$0xff]
        %v566 = vld [vmem:[#allocation3 + $0x38] sm:$0xff]
        %v567 = vld [vmem:[#allocation3 + $0x40] sm:$0xff]
        %v568 = vld [vmem:[#allocation3 + $0x48] sm:$0xff]
        %v569 = vld [vmem:[#allocation3 + $0x50] sm:$0xff]
        %v570 = vld [vmem:[#allocation3 + $0x58] sm:$0xff]
        %v571 = vld [vmem:[#allocation3 + $0x60] sm:$0xff]
        %v572 = vld [vmem:[#allocation3 + $0x68] sm:$0xff]
        %v573 = vld [vmem:[#allocation3 + $0x70] sm:$0xff]
        %v574 = vld [vmem:[#allocation3 + $0x78] sm:$0xff]
        %575 = vset.pattern.permute.xlu0 0
        %576 = vperm.xlu0 %575, %v543
        %v577 = vpop.permute.xlu0 %576
        %578 = vset.pattern.permute.xlu0 0
        %579 = vperm.xlu0 %578, %v544
        %v580 = vpop.permute.xlu0 %579
        %581 = vset.pattern.permute.xlu0 0
        %582 = vperm.xlu0 %581, %v545
        %v583 = vpop.permute.xlu0 %582
        %584 = vset.pattern.permute.xlu0 0
        %585 = vperm.xlu0 %584, %v546
        %v586 = vpop.permute.xlu0 %585
        %587 = vset.pattern.permute.xlu0 0
        %588 = vperm.xlu0 %587, %v547
        %v589 = vpop.permute.xlu0 %588
        %590 = vset.pattern.permute.xlu0 0
        %591 = vperm.xlu0 %590, %v548
        %v592 = vpop.permute.xlu0 %591
        %593 = vset.pattern.permute.xlu0 0
        %594 = vperm.xlu0 %593, %v549
        %v595 = vpop.permute.xlu0 %594
        %596 = vset.pattern.permute.xlu0 0
        %597 = vperm.xlu0 %596, %v550
        %v598 = vpop.permute.xlu0 %597
        %599 = vset.pattern.permute.xlu0 0
        %600 = vperm.xlu0 %599, %v551
        %v601 = vpop.permute.xlu0 %600
        %602 = vset.pattern.permute.xlu0 0
        %603 = vperm.xlu0 %602, %v552
        %v604 = vpop.permute.xlu0 %603
        %605 = vset.pattern.permute.xlu0 0
        %606 = vperm.xlu0 %605, %v553
        %v607 = vpop.permute.xlu0 %606
        %608 = vset.pattern.permute.xlu0 0
        %609 = vperm.xlu0 %608, %v554
        %v610 = vpop.permute.xlu0 %609
        %611 = vset.pattern.permute.xlu0 0
        %612 = vperm.xlu0 %611, %v555
        %v613 = vpop.permute.xlu0 %612
        %614 = vset.pattern.permute.xlu0 0
        %615 = vperm.xlu0 %614, %v556
        %v616 = vpop.permute.xlu0 %615
        %617 = vset.pattern.permute.xlu0 0
        %618 = vperm.xlu0 %617, %v557
        %v619 = vpop.permute.xlu0 %618
        %620 = vset.pattern.permute.xlu0 0
        %621 = vperm.xlu0 %620, %v558
        %v622 = vpop.permute.xlu0 %621
        %vm623 = vcmp.eq.s32.totalorder %v577, %v559
        %vm624 = vcmp.eq.s32.totalorder %v580, %v560
        %vm625 = vcmp.eq.s32.totalorder %v583, %v561
        %vm626 = vcmp.eq.s32.totalorder %v586, %v562
        %vm627 = vcmp.eq.s32.totalorder %v589, %v563
        %vm628 = vcmp.eq.s32.totalorder %v592, %v564
        %vm629 = vcmp.eq.s32.totalorder %v595, %v565
        %vm630 = vcmp.eq.s32.totalorder %v598, %v566
        %vm631 = vcmp.eq.s32.totalorder %v601, %v567
        %vm632 = vcmp.eq.s32.totalorder %v604, %v568
        %vm633 = vcmp.eq.s32.totalorder %v607, %v569
        %vm634 = vcmp.eq.s32.totalorder %v610, %v570
        %vm635 = vcmp.eq.s32.totalorder %v613, %v571
        %vm636 = vcmp.eq.s32.totalorder %v616, %v572
        %vm637 = vcmp.eq.s32.totalorder %v619, %v573
        %vm638 = vcmp.eq.s32.totalorder %v622, %v574
        %v639 = vsel %vm623, 1, 0
        %v640 = vsel %vm624, 1, 0
        %v641 = vsel %vm625, 1, 0
        %v642 = vsel %vm626, 1, 0
        %v643 = vsel %vm627, 1, 0
        %v644 = vsel %vm628, 1, 0
        %v645 = vsel %vm629, 1, 0
        %v646 = vsel %vm630, 1, 0
        %v647 = vsel %vm631, 1, 0
        %v648 = vsel %vm632, 1, 0
        %v649 = vsel %vm633, 1, 0
        %v650 = vsel %vm634, 1, 0
        %v651 = vsel %vm635, 1, 0
        %v652 = vsel %vm636, 1, 0
        %v653 = vsel %vm637, 1, 0
        %v654 = vsel %vm638, 1, 0
        %v655 = vcvt.s32.f32 %v639
        %v656 = vcvt.s32.f32 %v640
        %v657 = vcvt.s32.f32 %v641
        %v658 = vcvt.s32.f32 %v642
        %v659 = vcvt.s32.f32 %v643
        %v660 = vcvt.s32.f32 %v644
        %v661 = vcvt.s32.f32 %v645
        %v662 = vcvt.s32.f32 %v646
        %v663 = vcvt.s32.f32 %v647
        %v664 = vcvt.s32.f32 %v648
        %v665 = vcvt.s32.f32 %v649
        %v666 = vcvt.s32.f32 %v650
        %v667 = vcvt.s32.f32 %v651
        %v668 = vcvt.s32.f32 %v652
        %v669 = vcvt.s32.f32 %v653
        %v670 = vcvt.s32.f32 %v654
        %v671 = vpack.c.bf16 %v656, %v655
        %v672 = vpack.c.bf16 %v658, %v657
        %v673 = vpack.c.bf16 %v660, %v659
        %v674 = vpack.c.bf16 %v662, %v661
        %v675 = vpack.c.bf16 %v664, %v663
        %v676 = vpack.c.bf16 %v666, %v665
        %v677 = vpack.c.bf16 %v668, %v667
        %v678 = vpack.c.bf16 %v670, %v669
        %v679 = vld [vmem:[#allocation2] sm:$0xff]
        %v680 = vld [vmem:[#allocation2 + $0x8] sm:$0xff]
        %v681 = vld [vmem:[#allocation2 + $0x10] sm:$0xff]
        %v682 = vld [vmem:[#allocation2 + $0x18] sm:$0xff]
        %vm683 = vcmask 130048
        %v685 = vsel %vm683, %v671, 0
        %v688 = vsel %vm683, %v672, 0
        %v691 = vsel %vm683, %v673, 0
        %v694 = vsel %vm683, %v674, 0
        %v697 = vsel %vm683, %v675, 0
        %v700 = vsel %vm683, %v676, 0
        %v703 = vsel %vm683, %v677, 0
        %v706 = vsel %vm683, %v678, 0
        %708 = vmatprep.subr.bf16.mxu0 %v680
        %709 = vmatpush1.bf16.msra.mxu0 %v679
        %710 = vmatprep.subr.bf16.mxu0 0
        %711 = vmatpush1.bf16.msra.mxu0 0
        %712 = vmatprep.subr.bf16.mxu0 0
        %713 = vmatpush1.bf16.msra.mxu0 0
        %714 = vmatprep.subr.bf16.mxu0 0
        %715 = vmatpush1.bf16.msra.mxu0 0
        %716 = vmatprep.subr.bf16.mxu0 0
        %717 = vmatpush1.bf16.msra.mxu0 0
        %718 = vmatprep.subr.bf16.mxu0 0
        %719 = vmatpush1.bf16.msra.mxu0 0
        %720 = vmatprep.subr.bf16.mxu0 0
        %721 = vmatpush1.bf16.msra.mxu0 0
        %722 = vmatprep.subr.bf16.mxu0 0
        %723 = vmatpush1.bf16.msra.mxu0 0
        %724 = vmatprep.subr.bf16.mxu0 0
        %725 = vmatpush1.bf16.msra.mxu0 0
        %726 = vmatprep.subr.bf16.mxu0 0
        %727 = vmatpush1.bf16.msra.mxu0 0
        %728 = vmatprep.subr.bf16.mxu0 0
        %729 = vmatpush1.bf16.msra.mxu0 0
        %730 = vmatprep.subr.bf16.mxu0 0
        %731 = vmatpush1.bf16.msra.mxu0 0
        %732 = vmatprep.subr.bf16.mxu0 0
        %733 = vmatpush1.bf16.msra.mxu0 0
        %734 = vmatprep.subr.bf16.mxu0 0
        %735 = vmatpush1.bf16.msra.mxu0 0
        %736 = vmatprep.subr.bf16.mxu0 0
        %737 = vmatpush1.bf16.msra.mxu0 0
        %738 = vmatprep.subr.bf16.mxu0 0
        %739 = vmatpush1.bf16.msra.mxu0 0
        %740 = vmatprep.mubr.bf16.mxu0 0
        %741 = vmatmul.mubr.bf16.gmra.mrb[0].mxu0 %v685
        %v742 = vpop.f32.mrb[0].mxu0
        %v743 = vadd.f32 0.0, %v742
        %v744 = vpop.f32.mrb[0].mxu0
        %v745 = vadd.f32 0.0, %v744
        %v746 = vpop.f32.mrb[0].mxu0
        %v747 = vadd.f32 0.0, %v746
        %v748 = vpop.f32.mrb[0].mxu0
        %v749 = vadd.f32 0.0, %v748
        %750 = vmatprep.mubr.bf16.mxu0 0
        %751 = vmatmul.mubr.bf16.gmra.mrb[0].mxu0 %v688
        %v752 = vpop.f32.mrb[0].mxu0
        %v753 = vadd.f32 0.0, %v752
        %v754 = vpop.f32.mrb[0].mxu0
        %v755 = vadd.f32 0.0, %v754
        %v756 = vpop.f32.mrb[0].mxu0
        %v757 = vadd.f32 0.0, %v756
        %v758 = vpop.f32.mrb[0].mxu0
        %v759 = vadd.f32 0.0, %v758
        %760 = vmatprep.mubr.bf16.mxu0 0
        %761 = vmatmul.mubr.bf16.gmra.mrb[0].mxu0 %v691
        %v762 = vpop.f32.mrb[0].mxu0
        %v763 = vadd.f32 0.0, %v762
        %v764 = vpop.f32.mrb[0].mxu0
        %v765 = vadd.f32 0.0, %v764
        %v766 = vpop.f32.mrb[0].mxu0
        %v767 = vadd.f32 0.0, %v766
        %v768 = vpop.f32.mrb[0].mxu0
        %v769 = vadd.f32 0.0, %v768
        %770 = vmatprep.mubr.bf16.mxu0 0
        %771 = vmatmul.mubr.bf16.gmra.mrb[0].mxu0 %v694
        %v772 = vpop.f32.mrb[0].mxu0
        %v773 = vadd.f32 0.0, %v772
        %v774 = vpop.f32.mrb[0].mxu0
        %v775 = vadd.f32 0.0, %v774
        %v776 = vpop.f32.mrb[0].mxu0
        %v777 = vadd.f32 0.0, %v776
        %v778 = vpop.f32.mrb[0].mxu0
        %v779 = vadd.f32 0.0, %v778
        %780 = vmatprep.mubr.bf16.mxu0 0
        %781 = vmatmul.mubr.bf16.gmra.mrb[0].mxu0 %v697
        %v782 = vpop.f32.mrb[0].mxu0
        %v783 = vadd.f32 0.0, %v782
        %v784 = vpop.f32.mrb[0].mxu0
        %v785 = vadd.f32 0.0, %v784
        %v786 = vpop.f32.mrb[0].mxu0
        %v787 = vadd.f32 0.0, %v786
        %v788 = vpop.f32.mrb[0].mxu0
        %v789 = vadd.f32 0.0, %v788
        %790 = vmatprep.mubr.bf16.mxu0 0
        %791 = vmatmul.mubr.bf16.gmra.mrb[0].mxu0 %v700
        %v792 = vpop.f32.mrb[0].mxu0
        %v793 = vadd.f32 0.0, %v792
        %v794 = vpop.f32.mrb[0].mxu0
        %v795 = vadd.f32 0.0, %v794
        %v796 = vpop.f32.mrb[0].mxu0
        %v797 = vadd.f32 0.0, %v796
        %v798 = vpop.f32.mrb[0].mxu0
        %v799 = vadd.f32 0.0, %v798
        %800 = vmatprep.mubr.bf16.mxu0 0
        %801 = vmatmul.mubr.bf16.gmra.mrb[0].mxu0 %v703
        %v802 = vpop.f32.mrb[0].mxu0
        %v803 = vadd.f32 0.0, %v802
        %v804 = vpop.f32.mrb[0].mxu0
        %v805 = vadd.f32 0.0, %v804
        %v806 = vpop.f32.mrb[0].mxu0
        %v807 = vadd.f32 0.0, %v806
        %v808 = vpop.f32.mrb[0].mxu0
        %v809 = vadd.f32 0.0, %v808
        %810 = vmatprep.mubr.bf16.mxu0 0
        %811 = vmatmul.mubr.bf16.gmra.mrb[0].mxu0 %v706
        %v812 = vpop.f32.mrb[0].mxu0
        %v813 = vadd.f32 0.0, %v812
        %v814 = vpop.f32.mrb[0].mxu0
        %v815 = vadd.f32 0.0, %v814
        %v816 = vpop.f32.mrb[0].mxu0
        %v817 = vadd.f32 0.0, %v816
        %v818 = vpop.f32.mrb[0].mxu0
        %v819 = vadd.f32 0.0, %v818
        %820 = vdwg.mxu0
        %821 = vmatprep.subr.bf16.mxu0 %v682
        %822 = vmatpush1.bf16.msra.mxu0 %v681
        %823 = vmatprep.subr.bf16.mxu0 0
        %824 = vmatpush1.bf16.msra.mxu0 0
        %825 = vmatprep.subr.bf16.mxu0 0
        %826 = vmatpush1.bf16.msra.mxu0 0
        %827 = vmatprep.subr.bf16.mxu0 0
        %828 = vmatpush1.bf16.msra.mxu0 0
        %829 = vmatprep.subr.bf16.mxu0 0
        %830 = vmatpush1.bf16.msra.mxu0 0
        %831 = vmatprep.subr.bf16.mxu0 0
        %832 = vmatpush1.bf16.msra.mxu0 0
        %833 = vmatprep.subr.bf16.mxu0 0
        %834 = vmatpush1.bf16.msra.mxu0 0
        %835 = vmatprep.subr.bf16.mxu0 0
        %836 = vmatpush1.bf16.msra.mxu0 0
        %837 = vmatprep.subr.bf16.mxu0 0
        %838 = vmatpush1.bf16.msra.mxu0 0
        %839 = vmatprep.subr.bf16.mxu0 0
        %840 = vmatpush1.bf16.msra.mxu0 0
        %841 = vmatprep.subr.bf16.mxu0 0
        %842 = vmatpush1.bf16.msra.mxu0 0
        %843 = vmatprep.subr.bf16.mxu0 0
        %844 = vmatpush1.bf16.msra.mxu0 0
        %845 = vmatprep.subr.bf16.mxu0 0
        %846 = vmatpush1.bf16.msra.mxu0 0
        %847 = vmatprep.subr.bf16.mxu0 0
        %848 = vmatpush1.bf16.msra.mxu0 0
        %849 = vmatprep.subr.bf16.mxu0 0
        %850 = vmatpush1.bf16.msra.mxu0 0
        %851 = vmatprep.subr.bf16.mxu0 0
        %852 = vmatpush1.bf16.msra.mxu0 0
        %853 = vmatprep.mubr.bf16.mxu0 0
        %854 = vmatmul.mubr.bf16.gmra.mrb[0].mxu0 %v685
        %v855 = vpop.f32.mrb[0].mxu0
        %v856 = vadd.f32 0.0, %v855
        %v857 = vpop.f32.mrb[0].mxu0
        %v858 = vadd.f32 0.0, %v857
        %v859 = vpop.f32.mrb[0].mxu0
        %v860 = vadd.f32 0.0, %v859
        %v861 = vpop.f32.mrb[0].mxu0
        %v862 = vadd.f32 0.0, %v861
        %863 = vmatprep.mubr.bf16.mxu0 0
        %864 = vmatmul.mubr.bf16.gmra.mrb[0].mxu0 %v688
        %v865 = vpop.f32.mrb[0].mxu0
        %v866 = vadd.f32 0.0, %v865
        %v867 = vpop.f32.mrb[0].mxu0
        %v868 = vadd.f32 0.0, %v867
        %v869 = vpop.f32.mrb[0].mxu0
        %v870 = vadd.f32 0.0, %v869
        %v871 = vpop.f32.mrb[0].mxu0
        %v872 = vadd.f32 0.0, %v871
        %873 = vmatprep.mubr.bf16.mxu0 0
        %874 = vmatmul.mubr.bf16.gmra.mrb[0].mxu0 %v691
        %v875 = vpop.f32.mrb[0].mxu0
        %v876 = vadd.f32 0.0, %v875
        %v877 = vpop.f32.mrb[0].mxu0
        %v878 = vadd.f32 0.0, %v877
        %v879 = vpop.f32.mrb[0].mxu0
        %v880 = vadd.f32 0.0, %v879
        %v881 = vpop.f32.mrb[0].mxu0
        %v882 = vadd.f32 0.0, %v881
        %883 = vmatprep.mubr.bf16.mxu0 0
        %884 = vmatmul.mubr.bf16.gmra.mrb[0].mxu0 %v694
        %v885 = vpop.f32.mrb[0].mxu0
        %v886 = vadd.f32 0.0, %v885
        %v887 = vpop.f32.mrb[0].mxu0
        %v888 = vadd.f32 0.0, %v887
        %v889 = vpop.f32.mrb[0].mxu0
        %v890 = vadd.f32 0.0, %v889
        %v891 = vpop.f32.mrb[0].mxu0
        %v892 = vadd.f32 0.0, %v891
        %893 = vmatprep.mubr.bf16.mxu0 0
        %894 = vmatmul.mubr.bf16.gmra.mrb[0].mxu0 %v697
        %v895 = vpop.f32.mrb[0].mxu0
        %v896 = vadd.f32 0.0, %v895
        %v897 = vpop.f32.mrb[0].mxu0
        %v898 = vadd.f32 0.0, %v897
        %v899 = vpop.f32.mrb[0].mxu0
        %v900 = vadd.f32 0.0, %v899
        %v901 = vpop.f32.mrb[0].mxu0
        %v902 = vadd.f32 0.0, %v901
        %903 = vmatprep.mubr.bf16.mxu0 0
        %904 = vmatmul.mubr.bf16.gmra.mrb[0].mxu0 %v700
        %v905 = vpop.f32.mrb[0].mxu0
        %v906 = vadd.f32 0.0, %v905
        %v907 = vpop.f32.mrb[0].mxu0
        %v908 = vadd.f32 0.0, %v907
        %v909 = vpop.f32.mrb[0].mxu0
        %v910 = vadd.f32 0.0, %v909
        %v911 = vpop.f32.mrb[0].mxu0
        %v912 = vadd.f32 0.0, %v911
        %913 = vmatprep.mubr.bf16.mxu0 0
        %914 = vmatmul.mubr.bf16.gmra.mrb[0].mxu0 %v703
        %v915 = vpop.f32.mrb[0].mxu0
        %v916 = vadd.f32 0.0, %v915
        %v917 = vpop.f32.mrb[0].mxu0
        %v918 = vadd.f32 0.0, %v917
        %v919 = vpop.f32.mrb[0].mxu0
        %v920 = vadd.f32 0.0, %v919
        %v921 = vpop.f32.mrb[0].mxu0
        %v922 = vadd.f32 0.0, %v921
        %923 = vmatprep.mubr.bf16.mxu0 0
        %924 = vmatmul.mubr.bf16.gmra.mrb[0].mxu0 %v706
        %v925 = vpop.f32.mrb[0].mxu0
        %v926 = vadd.f32 0.0, %v925
        %v927 = vpop.f32.mrb[0].mxu0
        %v928 = vadd.f32 0.0, %v927
        %v929 = vpop.f32.mrb[0].mxu0
        %v930 = vadd.f32 0.0, %v929
        %v931 = vpop.f32.mrb[0].mxu0
        %v932 = vadd.f32 0.0, %v931
        %933 = vdwg.mxu0
        %v934 = vld [vmem:[%s294] sm:$0xff]
        %v935 = vld [vmem:[%s294 + $0x8] sm:$0xff]
        %v936 = vld [vmem:[%s294 + $0x10] sm:$0xff]
        %v937 = vld [vmem:[%s294 + $0x18] sm:$0xff]
        %v938 = vld [vmem:[%s294 + $0x20] sm:$0xff]
        %v939 = vld [vmem:[%s294 + $0x28] sm:$0xff]
        %v940 = vld [vmem:[%s294 + $0x30] sm:$0xff]
        %v941 = vld [vmem:[%s294 + $0x38] sm:$0xff]
        %v942 = vld [vmem:[%s294 + $0x40] sm:$0xff]
        %v943 = vld [vmem:[%s294 + $0x48] sm:$0xff]
        %v944 = vld [vmem:[%s294 + $0x50] sm:$0xff]
        %v945 = vld [vmem:[%s294 + $0x58] sm:$0xff]
        %v946 = vld [vmem:[%s294 + $0x60] sm:$0xff]
        %v947 = vld [vmem:[%s294 + $0x68] sm:$0xff]
        %v948 = vld [vmem:[%s294 + $0x70] sm:$0xff]
        %v949 = vld [vmem:[%s294 + $0x78] sm:$0xff]
        %951 = vset.pattern.permute.xlu0 0
        %952 = vperm.xlu0 %951, %v934
        %v953 = vpop.permute.xlu0 %952
        %956 = vset.pattern.permute.xlu0 0
        %957 = vperm.xlu0 %956, %v935
        %v958 = vpop.permute.xlu0 %957
        %961 = vset.pattern.permute.xlu0 0
        %962 = vperm.xlu0 %961, %v936
        %v963 = vpop.permute.xlu0 %962
        %966 = vset.pattern.permute.xlu0 0
        %967 = vperm.xlu0 %966, %v937
        %v968 = vpop.permute.xlu0 %967
        %971 = vset.pattern.permute.xlu0 0
        %972 = vperm.xlu0 %971, %v938
        %v973 = vpop.permute.xlu0 %972
        %976 = vset.pattern.permute.xlu0 0
        %977 = vperm.xlu0 %976, %v939
        %v978 = vpop.permute.xlu0 %977
        %981 = vset.pattern.permute.xlu0 0
        %982 = vperm.xlu0 %981, %v940
        %v983 = vpop.permute.xlu0 %982
        %986 = vset.pattern.permute.xlu0 0
        %987 = vperm.xlu0 %986, %v941
        %v988 = vpop.permute.xlu0 %987
        %991 = vset.pattern.permute.xlu0 0
        %992 = vperm.xlu0 %991, %v942
        %v993 = vpop.permute.xlu0 %992
        %996 = vset.pattern.permute.xlu0 0
        %997 = vperm.xlu0 %996, %v943
        %v998 = vpop.permute.xlu0 %997
        %1001 = vset.pattern.permute.xlu0 0
        %1002 = vperm.xlu0 %1001, %v944
        %v1003 = vpop.permute.xlu0 %1002
        %1006 = vset.pattern.permute.xlu0 0
        %1007 = vperm.xlu0 %1006, %v945
        %v1008 = vpop.permute.xlu0 %1007
        %1011 = vset.pattern.permute.xlu0 0
        %1012 = vperm.xlu0 %1011, %v946
        %v1013 = vpop.permute.xlu0 %1012
        %1016 = vset.pattern.permute.xlu0 0
        %1017 = vperm.xlu0 %1016, %v947
        %v1018 = vpop.permute.xlu0 %1017
        %1021 = vset.pattern.permute.xlu0 0
        %1022 = vperm.xlu0 %1021, %v948
        %v1023 = vpop.permute.xlu0 %1022
        %1026 = vset.pattern.permute.xlu0 0
        %1027 = vperm.xlu0 %1026, %v949
        %v1028 = vpop.permute.xlu0 %1027
        %v1030 = vmul.f32 %v953, %v743
        %v1031 = vmul.f32 %v958, %v747
        %v1032 = vmul.f32 %v963, %v753
        %v1033 = vmul.f32 %v968, %v757
        %v1034 = vmul.f32 %v973, %v763
        %v1035 = vmul.f32 %v978, %v767
        %v1036 = vmul.f32 %v983, %v773
        %v1037 = vmul.f32 %v988, %v777
        %v1038 = vmul.f32 %v993, %v783
        %v1039 = vmul.f32 %v998, %v787
        %v1040 = vmul.f32 %v1003, %v793
        %v1041 = vmul.f32 %v1008, %v797
        %v1042 = vmul.f32 %v1013, %v803
        %v1043 = vmul.f32 %v1018, %v807
        %v1044 = vmul.f32 %v1023, %v813
        %v1045 = vmul.f32 %v1028, %v817
        %1046 = vset.pattern.permute.xlu0 1
        %1047 = vperm.xlu0 %1046, %v934
        %v1048 = vpop.permute.xlu0 %1047
        %1050 = vset.pattern.permute.xlu0 1
        %1051 = vperm.xlu0 %1050, %v935
        %v1052 = vpop.permute.xlu0 %1051
        %1054 = vset.pattern.permute.xlu0 1
        %1055 = vperm.xlu0 %1054, %v936
        %v1056 = vpop.permute.xlu0 %1055
        %1058 = vset.pattern.permute.xlu0 1
        %1059 = vperm.xlu0 %1058, %v937
        %v1060 = vpop.permute.xlu0 %1059
        %1062 = vset.pattern.permute.xlu0 1
        %1063 = vperm.xlu0 %1062, %v938
        %v1064 = vpop.permute.xlu0 %1063
        %1066 = vset.pattern.permute.xlu0 1
        %1067 = vperm.xlu0 %1066, %v939
        %v1068 = vpop.permute.xlu0 %1067
        %1070 = vset.pattern.permute.xlu0 1
        %1071 = vperm.xlu0 %1070, %v940
        %v1072 = vpop.permute.xlu0 %1071
        %1074 = vset.pattern.permute.xlu0 1
        %1075 = vperm.xlu0 %1074, %v941
        %v1076 = vpop.permute.xlu0 %1075
        %1078 = vset.pattern.permute.xlu0 1
        %1079 = vperm.xlu0 %1078, %v942
        %v1080 = vpop.permute.xlu0 %1079
        %1082 = vset.pattern.permute.xlu0 1
        %1083 = vperm.xlu0 %1082, %v943
        %v1084 = vpop.permute.xlu0 %1083
        %1086 = vset.pattern.permute.xlu0 1
        %1087 = vperm.xlu0 %1086, %v944
        %v1088 = vpop.permute.xlu0 %1087
        %1090 = vset.pattern.permute.xlu0 1
        %1091 = vperm.xlu0 %1090, %v945
        %v1092 = vpop.permute.xlu0 %1091
        %1094 = vset.pattern.permute.xlu0 1
        %1095 = vperm.xlu0 %1094, %v946
        %v1096 = vpop.permute.xlu0 %1095
        %1098 = vset.pattern.permute.xlu0 1
        %1099 = vperm.xlu0 %1098, %v947
        %v1100 = vpop.permute.xlu0 %1099
        %1102 = vset.pattern.permute.xlu0 1
        %1103 = vperm.xlu0 %1102, %v948
        %v1104 = vpop.permute.xlu0 %1103
        %1106 = vset.pattern.permute.xlu0 1
        %1107 = vperm.xlu0 %1106, %v949
        %v1108 = vpop.permute.xlu0 %1107
        %v1110 = vmul.f32 %v1048, %v745
        %v1111 = vmul.f32 %v1052, %v749
        %v1112 = vmul.f32 %v1056, %v755
        %v1113 = vmul.f32 %v1060, %v759
        %v1114 = vmul.f32 %v1064, %v765
        %v1115 = vmul.f32 %v1068, %v769
        %v1116 = vmul.f32 %v1072, %v775
        %v1117 = vmul.f32 %v1076, %v779
        %v1118 = vmul.f32 %v1080, %v785
        %v1119 = vmul.f32 %v1084, %v789
        %v1120 = vmul.f32 %v1088, %v795
        %v1121 = vmul.f32 %v1092, %v799
        %v1122 = vmul.f32 %v1096, %v805
        %v1123 = vmul.f32 %v1100, %v809
        %v1124 = vmul.f32 %v1104, %v815
        %v1125 = vmul.f32 %v1108, %v819
        %v1126 = vadd.f32 %v1030, %v1110
        %v1127 = vadd.f32 %v1031, %v1111
        %v1128 = vadd.f32 %v1032, %v1112
        %v1129 = vadd.f32 %v1033, %v1113
        %v1130 = vadd.f32 %v1034, %v1114
        %v1131 = vadd.f32 %v1035, %v1115
        %v1132 = vadd.f32 %v1036, %v1116
        %v1133 = vadd.f32 %v1037, %v1117
        %v1134 = vadd.f32 %v1038, %v1118
        %v1135 = vadd.f32 %v1039, %v1119
        %v1136 = vadd.f32 %v1040, %v1120
        %v1137 = vadd.f32 %v1041, %v1121
        %v1138 = vadd.f32 %v1042, %v1122
        %v1139 = vadd.f32 %v1043, %v1123
        %v1140 = vadd.f32 %v1044, %v1124
        %v1141 = vadd.f32 %v1045, %v1125
        %1142 = vset.pattern.permute.xlu0 2
        %1143 = vperm.xlu0 %1142, %v934
        %v1144 = vpop.permute.xlu0 %1143
        %1146 = vset.pattern.permute.xlu0 2
        %1147 = vperm.xlu0 %1146, %v935
        %v1148 = vpop.permute.xlu0 %1147
        %1150 = vset.pattern.permute.xlu0 2
        %1151 = vperm.xlu0 %1150, %v936
        %v1152 = vpop.permute.xlu0 %1151
        %1154 = vset.pattern.permute.xlu0 2
        %1155 = vperm.xlu0 %1154, %v937
        %v1156 = vpop.permute.xlu0 %1155
        %1158 = vset.pattern.permute.xlu0 2
        %1159 = vperm.xlu0 %1158, %v938
        %v1160 = vpop.permute.xlu0 %1159
        %1162 = vset.pattern.permute.xlu0 2
        %1163 = vperm.xlu0 %1162, %v939
        %v1164 = vpop.permute.xlu0 %1163
        %1166 = vset.pattern.permute.xlu0 2
        %1167 = vperm.xlu0 %1166, %v940
        %v1168 = vpop.permute.xlu0 %1167
        %1170 = vset.pattern.permute.xlu0 2
        %1171 = vperm.xlu0 %1170, %v941
        %v1172 = vpop.permute.xlu0 %1171
        %1174 = vset.pattern.permute.xlu0 2
        %1175 = vperm.xlu0 %1174, %v942
        %v1176 = vpop.permute.xlu0 %1175
        %1178 = vset.pattern.permute.xlu0 2
        %1179 = vperm.xlu0 %1178, %v943
        %v1180 = vpop.permute.xlu0 %1179
        %1182 = vset.pattern.permute.xlu0 2
        %1183 = vperm.xlu0 %1182, %v944
        %v1184 = vpop.permute.xlu0 %1183
        %1186 = vset.pattern.permute.xlu0 2
        %1187 = vperm.xlu0 %1186, %v945
        %v1188 = vpop.permute.xlu0 %1187
        %1190 = vset.pattern.permute.xlu0 2
        %1191 = vperm.xlu0 %1190, %v946
        %v1192 = vpop.permute.xlu0 %1191
        %1194 = vset.pattern.permute.xlu0 2
        %1195 = vperm.xlu0 %1194, %v947
        %v1196 = vpop.permute.xlu0 %1195
        %1198 = vset.pattern.permute.xlu0 2
        %1199 = vperm.xlu0 %1198, %v948
        %v1200 = vpop.permute.xlu0 %1199
        %1202 = vset.pattern.permute.xlu0 2
        %1203 = vperm.xlu0 %1202, %v949
        %v1204 = vpop.permute.xlu0 %1203
        %v1206 = vmul.f32 %v1144, %v856
        %v1207 = vmul.f32 %v1148, %v860
        %v1208 = vmul.f32 %v1152, %v866
        %v1209 = vmul.f32 %v1156, %v870
        %v1210 = vmul.f32 %v1160, %v876
        %v1211 = vmul.f32 %v1164, %v880
        %v1212 = vmul.f32 %v1168, %v886
        %v1213 = vmul.f32 %v1172, %v890
        %v1214 = vmul.f32 %v1176, %v896
        %v1215 = vmul.f32 %v1180, %v900
        %v1216 = vmul.f32 %v1184, %v906
        %v1217 = vmul.f32 %v1188, %v910
        %v1218 = vmul.f32 %v1192, %v916
        %v1219 = vmul.f32 %v1196, %v920
        %v1220 = vmul.f32 %v1200, %v926
        %v1221 = vmul.f32 %v1204, %v930
        %v1222 = vadd.f32 %v1126, %v1206
        %v1223 = vadd.f32 %v1127, %v1207
        %v1224 = vadd.f32 %v1128, %v1208
        %v1225 = vadd.f32 %v1129, %v1209
        %v1226 = vadd.f32 %v1130, %v1210
        %v1227 = vadd.f32 %v1131, %v1211
        %v1228 = vadd.f32 %v1132, %v1212
        %v1229 = vadd.f32 %v1133, %v1213
        %v1230 = vadd.f32 %v1134, %v1214
        %v1231 = vadd.f32 %v1135, %v1215
        %v1232 = vadd.f32 %v1136, %v1216
        %v1233 = vadd.f32 %v1137, %v1217
        %v1234 = vadd.f32 %v1138, %v1218
        %v1235 = vadd.f32 %v1139, %v1219
        %v1236 = vadd.f32 %v1140, %v1220
        %v1237 = vadd.f32 %v1141, %v1221
        %1238 = vset.pattern.permute.xlu0 3
        %1239 = vperm.xlu0 %1238, %v934
        %v1240 = vpop.permute.xlu0 %1239
        %1242 = vset.pattern.permute.xlu0 3
        %1243 = vperm.xlu0 %1242, %v935
        %v1244 = vpop.permute.xlu0 %1243
        %1246 = vset.pattern.permute.xlu0 3
        %1247 = vperm.xlu0 %1246, %v936
        %v1248 = vpop.permute.xlu0 %1247
        %1250 = vset.pattern.permute.xlu0 3
        %1251 = vperm.xlu0 %1250, %v937
        %v1252 = vpop.permute.xlu0 %1251
        %1254 = vset.pattern.permute.xlu0 3
        %1255 = vperm.xlu0 %1254, %v938
        %v1256 = vpop.permute.xlu0 %1255
        %1258 = vset.pattern.permute.xlu0 3
        %1259 = vperm.xlu0 %1258, %v939
        %v1260 = vpop.permute.xlu0 %1259
        %1262 = vset.pattern.permute.xlu0 3
        %1263 = vperm.xlu0 %1262, %v940
        %v1264 = vpop.permute.xlu0 %1263
        %1266 = vset.pattern.permute.xlu0 3
        %1267 = vperm.xlu0 %1266, %v941
        %v1268 = vpop.permute.xlu0 %1267
        %1270 = vset.pattern.permute.xlu0 3
        %1271 = vperm.xlu0 %1270, %v942
        %v1272 = vpop.permute.xlu0 %1271
        %1274 = vset.pattern.permute.xlu0 3
        %1275 = vperm.xlu0 %1274, %v943
        %v1276 = vpop.permute.xlu0 %1275
        %1278 = vset.pattern.permute.xlu0 3
        %1279 = vperm.xlu0 %1278, %v944
        %v1280 = vpop.permute.xlu0 %1279
        %1282 = vset.pattern.permute.xlu0 3
        %1283 = vperm.xlu0 %1282, %v945
        %v1284 = vpop.permute.xlu0 %1283
        %1286 = vset.pattern.permute.xlu0 3
        %1287 = vperm.xlu0 %1286, %v946
        %v1288 = vpop.permute.xlu0 %1287
        %1290 = vset.pattern.permute.xlu0 3
        %1291 = vperm.xlu0 %1290, %v947
        %v1292 = vpop.permute.xlu0 %1291
        %1294 = vset.pattern.permute.xlu0 3
        %1295 = vperm.xlu0 %1294, %v948
        %v1296 = vpop.permute.xlu0 %1295
        %1298 = vset.pattern.permute.xlu0 3
        %1299 = vperm.xlu0 %1298, %v949
        %v1300 = vpop.permute.xlu0 %1299
        %v1302 = vmul.f32 %v1240, %v858
        %v1303 = vmul.f32 %v1244, %v862
        %v1304 = vmul.f32 %v1248, %v868
        %v1305 = vmul.f32 %v1252, %v872
        %v1306 = vmul.f32 %v1256, %v878
        %v1307 = vmul.f32 %v1260, %v882
        %v1308 = vmul.f32 %v1264, %v888
        %v1309 = vmul.f32 %v1268, %v892
        %v1310 = vmul.f32 %v1272, %v898
        %v1311 = vmul.f32 %v1276, %v902
        %v1312 = vmul.f32 %v1280, %v908
        %v1313 = vmul.f32 %v1284, %v912
        %v1314 = vmul.f32 %v1288, %v918
        %v1315 = vmul.f32 %v1292, %v922
        %v1316 = vmul.f32 %v1296, %v928
        %v1317 = vmul.f32 %v1300, %v932
        %v1318 = vadd.f32 %v1222, %v1302
        %v1319 = vadd.f32 %v1223, %v1303
        %v1320 = vadd.f32 %v1224, %v1304
        %v1321 = vadd.f32 %v1225, %v1305
        %v1322 = vadd.f32 %v1226, %v1306
        %v1323 = vadd.f32 %v1227, %v1307
        %v1324 = vadd.f32 %v1228, %v1308
        %v1325 = vadd.f32 %v1229, %v1309
        %v1326 = vadd.f32 %v1230, %v1310
        %v1327 = vadd.f32 %v1231, %v1311
        %v1328 = vadd.f32 %v1232, %v1312
        %v1329 = vadd.f32 %v1233, %v1313
        %v1330 = vadd.f32 %v1234, %v1314
        %v1331 = vadd.f32 %v1235, %v1315
        %v1332 = vadd.f32 %v1236, %v1316
        %v1333 = vadd.f32 %v1237, %v1317
        %v1334 = vld [vmem:[#allocation4] sm:$0xff]
        %v1335 = vld [vmem:[#allocation4 + $0x8] sm:$0xff]
        %v1336 = vld [vmem:[%s312] sm:$0x1]
        %v1337 = vlaneseq
        %v1338 = vshrl.u32 %v1337, 7
        %v1339 = vsub.s32 0, %v1338
        %v1340 = vrot.slane %v1336, %v1339
        %vm1341 = vcmp.eq.s32.totalorder %v1334, %v1340
        %vm1342 = vcmp.eq.s32.totalorder %v1335, %v1340
        %v1343 = vsel %vm1341, 1, 0
        %v1344 = vsel %vm1342, 1, 0
        %v1345 = vcvt.s32.f32 %v1343
        %v1346 = vcvt.s32.f32 %v1344
        %v1347 = vpack.c.bf16 %v1346, %v1345
        %v1348 = vld [vmem:[%s287] sm:$0xff]
        %v1349 = vld [vmem:[%s287 + $0x8] sm:$0xff]
        %v1350 = vpack.c.bf16 %v1319, %v1318
        %v1351 = vpack.c.bf16 %v1321, %v1320
        %v1352 = vpack.c.bf16 %v1323, %v1322
        %v1353 = vpack.c.bf16 %v1325, %v1324
        %v1354 = vpack.c.bf16 %v1327, %v1326
        %v1355 = vpack.c.bf16 %v1329, %v1328
        %v1356 = vpack.c.bf16 %v1331, %v1330
        %v1357 = vpack.c.bf16 %v1333, %v1332
        %1358 = vmatprep.subr.bf16.mxu0 0
        %1359 = vmatpush1.bf16.msra.mxu0 %v1350
        %1360 = vmatprep.subr.bf16.mxu0 0
        %1361 = vmatpush1.bf16.msra.mxu0 %v1351
        %1362 = vmatprep.subr.bf16.mxu0 0
        %1363 = vmatpush1.bf16.msra.mxu0 %v1352
        %1364 = vmatprep.subr.bf16.mxu0 0
        %1365 = vmatpush1.bf16.msra.mxu0 %v1353
        %1366 = vmatprep.subr.bf16.mxu0 0
        %1367 = vmatpush1.bf16.msra.mxu0 %v1354
        %1368 = vmatprep.subr.bf16.mxu0 0
        %1369 = vmatpush1.bf16.msra.mxu0 %v1355
        %1370 = vmatprep.subr.bf16.mxu0 0
        %1371 = vmatpush1.bf16.msra.mxu0 %v1356
        %1372 = vmatprep.subr.bf16.mxu0 0
        %1373 = vmatpush1.bf16.msra.mxu0 %v1357
        %1374 = vmatprep.subr.bf16.mxu0 0
        %1375 = vmatpush1.bf16.msra.mxu0 0
        %1376 = vmatprep.subr.bf16.mxu0 0
        %1377 = vmatpush1.bf16.msra.mxu0 0
        %1378 = vmatprep.subr.bf16.mxu0 0
        %1379 = vmatpush1.bf16.msra.mxu0 0
        %1380 = vmatprep.subr.bf16.mxu0 0
        %1381 = vmatpush1.bf16.msra.mxu0 0
        %1382 = vmatprep.subr.bf16.mxu0 0
        %1383 = vmatpush1.bf16.msra.mxu0 0
        %1384 = vmatprep.subr.bf16.mxu0 0
        %1385 = vmatpush1.bf16.msra.mxu0 0
        %1386 = vmatprep.subr.bf16.mxu0 0
        %1387 = vmatpush1.bf16.msra.mxu0 0
        %1388 = vmatprep.subr.bf16.mxu0 0
        %1389 = vmatpush1.bf16.msra.mxu0 0
        %1390 = vmatprep.mubr.bf16.mxu0 0
        %1391 = vmatmul.mubr.bf16.gmra.mrb[0].mxu0 %v1347
        %v1392 = vpop.f32.mrb[0].mxu0
        %v1393 = vadd.f32 0.0, %v1392
        %v1394 = vpop.f32.mrb[0].mxu0
        %v1395 = vpop.f32.mrb[0].mxu0
        %v1396 = vadd.f32 0.0, %v1395
        %v1397 = vpop.f32.mrb[0].mxu0
        %1398 = vdwg.mxu0
        %v1399 = vadd.f32 %v1348, %v1393
        %v1400 = vadd.f32 %v1349, %v1396
        %1401 = vst [vmem:[%s287] sm:$0xff] %v1399
        %1402 = vst [vmem:[%s287 + $0x8] sm:$0xff] %v1400
        %s1403 = sand.u32 %s171, 1
        %s1404 = scalar_lea.sflag [#allocation6], %s1403
        %s1405 = sand.u32 %s171, 1
        %s1406 = smul.addr %s1405, 16
        %s1407 = scalar_lea.vmem [#allocation5], %s1406
        // Predicated region
        $region45: #{tpu_custom_call.1} parent=39 // pred_check
          %p1408 = pneg %p181
        $region46: #{tpu_custom_call.1} parent=39 // pred_check_branch
          %1410 = sbr.rel (%p1408) target = $region48
        $region47: #{tpu_custom_call.1} parent=39 // pred_region
          %s1411 = smul.u32 2, %s23
          %s1413 = ssub.s32 256, 256
          %1414 = vsyncadd %s1404, %s1413
          %s1415 = smul.addr %s1411, 128
          %s1416 = scalar_lea.hbm %s5, %s1415
          %s1417 = sshll.u32 %s1407, 4
          %s1418 = int_to_ptr.vmem [resolvable:$true] %s1417
          %1423 = dma.vmem_to_hbm [thread:$0]  %s1418, 256, %s1416, %s1404, 128, 128, 8
        $region48: #{tpu_custom_call.1} parent=39 // pred_fallthru
          _
      $region40: #{tpu_custom_call.1} parent=5 // pred_fallthru
        _
      %p1424 = scmp.le.s32.totalorder 2, %s14
      // Predicated region
      $region49: #{tpu_custom_call.1} parent=5 // pred_check
        %p1425 = pneg %p1424
      $region50: #{tpu_custom_call.1} parent=5 // pred_check_branch
        %1427 = sbr.rel (%p1425) target = $region52
      $region51: #{tpu_custom_call.1} parent=5 // pred_region
        %s1428 = ssub.s32 %s14, 2
        // Predicated region
        $region53: #{tpu_custom_call.1} parent=51 // pred_check
          %p1429 = pneg %p187
        $region54: #{tpu_custom_call.1} parent=51 // pred_check_branch
          %1431 = sbr.rel (%p1429) target = $region56
        $region55: #{tpu_custom_call.1} parent=51 // pred_region
          %s1432 = sand.u32 %s172, 1
          %s1433 = scalar_lea.sflag [#allocation6], %s1432
          %s1434 = sand.u32 %s172, 1
          %s1435 = smul.addr %s1434, 16
          %s1436 = scalar_lea.vmem [#allocation5], %s1435
          %1437 = dma.done %s1433, 256
        $region56: #{tpu_custom_call.1} parent=51 // pred_fallthru
          _
      $region52: #{tpu_custom_call.1} parent=5 // pred_fallthru
        _
    $region6: #{tpu_custom_call.1} parent=1 // loop_footer
      %s18 = sadd.s32 1, %s14
    $region7: #{tpu_custom_call.1} parent=1 // loop_footer_branch
      %13 = sbr.rel target = $region3
    $region8: #{tpu_custom_call.1} parent=1 // loop_exit
      _
    %1438 = vsyncpa [#allocation6], 1
    %s1439 = scalar_lea.sflag [#allocation6], 1
    %1440 = vsyncpa %s1439, 1

</llo_original>
